<compile_context>
chip_gen: v7x
topology: tpu7x:2x2x1
jax: 0.10.0
libtpu: 0.0.40
codegen_flags: <defaults>
</compile_context>

<pallas_src>
import jax
import jax.numpy as jnp
from jax.experimental import pallas as pl
from jax.experimental.pallas import tpu as pltpu

LANE = 128  # padded feature width (all feature dims here are <= 128)


# --------------------------------------------------------------------------
# Generation detection (act dtype / VMEM cap / megacore preference)
# --------------------------------------------------------------------------
def _device_traits():
    try:
        kind = jax.devices()[0].device_kind.lower()
    except Exception:
        kind = ""
    older = any(t in kind for t in ("v2", "v3", "v4", "v5"))
    is_v6 = "v6" in kind
    v7plus = (not older) and (not is_v6)
    # bf16 VPU/EUP exists on v6e and newer; keep f32 element-wise on v5e/older.
    act_dtype = jnp.bfloat16 if (is_v6 or v7plus) else jnp.float32
    return act_dtype, v7plus


# --------------------------------------------------------------------------
# Kernels
# --------------------------------------------------------------------------
def _make_encoder_kernel(n_latents, tile_b, S, x_dim, Dp, act_dtype):
    """in_block + n_latents residual h_blocks + per-sequence max, one batch tile."""

    def kernel(x_ref, w_ref, b_ref, hs_ref, m_ref):
        def linear(h, layer):
            hb = h if h.dtype == jnp.bfloat16 else h.astype(jnp.bfloat16)
            z = jnp.dot(hb, w_ref[layer], preferred_element_type=jnp.float32)
            return z + b_ref[layer]                      # f32, (rows, Dp)

        def act(z):
            # SiLU in f32 (safe on v5e); the divide goes to the EUP via the
            # approximate reciprocal; one cast at the output feeds the next
            # bf16 MXU matmul directly on v6e/v7x.
            s = pl.reciprocal(1.0 + jnp.exp(-z), approx=True)
            return (z * s).astype(act_dtype)

        # ---- in_block: first matmul consumes x at native width (K = x_dim).
        x = x_ref[...]                                   # (tile_n, x_dim) bf16
        a = act(jnp.dot(x, w_ref[0][:x_dim, :],
                        preferred_element_type=jnp.float32) + b_ref[0])
        a = act(linear(a, 1))
        a = act(linear(a, 2))
        h = a.astype(jnp.float32)                        # (tile_n, Dp), padded lanes == 0

        # ---- residual h_blocks (residual carry kept in f32).
        for i in range(n_latents):
            base = 3 * (i + 1)
            z = act(linear(h, base))
            z = act(linear(z, base + 1))
            z = act(linear(z, base + 2))
            h = h + z.astype(jnp.float32)
            hs_ref[i] = h.astype(jnp.bfloat16)           # lane-dense (tile_n, Dp) store

        # ---- per-sequence max: this tile holds tile_b complete sequences.
        # NOTE: if S % 8 != 0 this reshape crosses sublane tiles and costs a
        # relayout copy (still correct); keep S a multiple of 8 for speed.
        m_ref[0] = jnp.max(h.reshape(tile_b, S, Dp), axis=1)   # (tile_b, Dp) f32

    return kernel


def _make_e_kernel(e_dim, act_dtype):
    """e_block over all B per-sequence max rows (single tiny call)."""

    def kernel(m_ref, w_ref, b_ref, e_ref):
        def linear(h, layer):
            hb = h if h.dtype == jnp.bfloat16 else h.astype(jnp.bfloat16)
            return jnp.dot(hb, w_ref[layer],
                           preferred_element_type=jnp.float32) + b_ref[layer]

        def act(z):
            s = pl.reciprocal(1.0 + jnp.exp(-z), approx=True)
            return (z * s).astype(act_dtype)

        a = act(linear(m_ref[...], 0))
        a = act(linear(a, 1))
        a = act(linear(a, 2))
        e_ref[...] = a[:, :e_dim].astype(jnp.float32)

    return kernel


# --------------------------------------------------------------------------
# Parameters (PyTorch nn.Linear-style uniform init), packing & padding
# --------------------------------------------------------------------------
def _layer_dims(n_latents, x_dim, h_dim, hid_dim, e_dim):
    dims = [(x_dim, hid_dim), (hid_dim, hid_dim), (hid_dim, h_dim)]       # in_block
    for _ in range(n_latents):                                            # h_blocks
        dims += [(h_dim, hid_dim), (hid_dim, hid_dim), (hid_dim, h_dim)]
    dims += [(h_dim, hid_dim), (hid_dim, hid_dim), (hid_dim, e_dim)]      # e_block
    return dims


def _init_linear(key, in_dim, out_dim):
    kw, kb = jax.random.split(key)
    bound = 1.0 / jnp.sqrt(jnp.float32(in_dim))
    w = jax.random.uniform(kw, (in_dim, out_dim), jnp.float32, -bound, bound)
    b = jax.random.uniform(kb, (1, out_dim), jnp.float32, -bound, bound)
    return w, b


def init_encoder_params(key, n_latents, x_dim, h_dim, hid_dim, e_dim):
    dims = _layer_dims(n_latents, x_dim, h_dim, hid_dim, e_dim)
    keys = jax.random.split(key, len(dims))
    flat = []
    for k, (di, do) in zip(keys, dims):
        w, b = _init_linear(k, di, do)
        flat += [w, b]
    return flat
    # NOTE: h_cond_blocks are not used by Encoder.forward -> not materialized.


def _pack_params(flat_params, dims, Dp):
    """Zero-pad every (in,out) weight to (Dp,Dp) and stack; biases to (1,Dp).

    The zero padding (weights AND biases) is load-bearing: it keeps lanes
    beyond the real feature width exactly zero through every layer.
    """
    ws, bs = [], []
    for k, (di, do) in enumerate(dims):
        w = flat_params[2 * k]
        b = flat_params[2 * k + 1]
        wp = jnp.zeros((Dp, Dp), jnp.float32).at[:di, :do].set(w)
        bp = jnp.zeros((1, Dp), jnp.float32).at[:, :do].set(b.reshape(1, do))
        ws.append(wp)
        bs.append(bp)
    w_packed = jnp.stack(ws).astype(jnp.bfloat16)   # (L, Dp, Dp) bf16 MXU operand
    b_packed = jnp.stack(bs)                        # (L, 1, Dp)  f32
    return w_packed, b_packed


# --------------------------------------------------------------------------
# Wrapper
# --------------------------------------------------------------------------
def encoder_forward(x, flat_params, *, n_latents, x_dim, h_dim, hid_dim, e_dim,
                    tile_b=None):
    B, S, xd = x.shape
    assert xd == x_dim
    N = B * S
    Dp = LANE
    assert max(x_dim, h_dim, hid_dim, e_dim) <= Dp

    act_dtype, v7plus = _device_traits()

    dims = _layer_dims(n_latents, x_dim, h_dim, hid_dim, e_dim)
    n_main = 3 * (n_latents + 1)                    # in_block + h_blocks layers
    w_packed, b_packed = _pack_params(flat_params, dims, Dp)
    w_main, b_main = w_packed[:n_main], b_packed[:n_main]
    w_e, b_e = w_packed[n_main:], b_packed[n_main:]

    # x streamed at native width in bf16 (it is cast to bf16 at the first
    # matmul anyway) -- no padded-f32 copy in HBM.
    x_flat = x.reshape(N, x_dim).astype(jnp.bfloat16)

    # Row-tile heuristic: biggest divisor of B whose tile fits the VMEM budget
    # (<= ~36 MiB on v7x, ~80 MiB on v5e/v6e), capped at 8192 rows; on v7x keep
    # >= 2 grid steps so the "parallel" axis shards across both TensorCores.
    if tile_b is None:
        bytes_per_row = (2 * x_dim * 2              # x stream, double buffered (bf16)
                         + 2 * n_latents * Dp * 2   # hs output, double buffered (bf16)
                         + 8 * Dp * 4)              # live f32 intermediates
        budget = (36 << 20) if v7plus else (80 << 20)
        max_rows = max(S, min(8192, budget // max(bytes_per_row, 1)))
        divisors = [d for d in range(1, B + 1) if B % d == 0]
        ok = [d for d in divisors
              if d * S <= max_rows and (d * S == N or (d * S) % 16 == 0)]
        multi = [d for d in ok if B // d >= 2]
        if v7plus and B > 1 and multi:
            tile_b = max(multi)
        elif ok:
            tile_b = max(ok)
        else:
            tile_b = B
    assert B % tile_b == 0
    tile_n = tile_b * S
    assert tile_n == N or tile_n % 16 == 0          # bf16 sublane-packing safe
    num_tiles = B // tile_b

    kernel = _make_encoder_kernel(n_latents, tile_b, S, x_dim, Dp, act_dtype)

    in_specs = [
        pl.BlockSpec((tile_n, x_dim), lambda i: (i, 0)),           # x: streamed
        pl.BlockSpec((n_main, Dp, Dp), lambda i: (0, 0, 0)),       # W: VMEM resident
        pl.BlockSpec((n_main, 1, Dp), lambda i: (0, 0, 0)),        # b: VMEM resident
    ]
    out_specs = (
        pl.BlockSpec((n_latents, tile_n, Dp), lambda i: (0, i, 0)),  # merged hs, lane-dense
        pl.BlockSpec((1, tile_b, Dp), lambda i: (i, 0, 0)),          # per-sequence max
    )
    out_shape = (
        jax.ShapeDtypeStruct((n_latents, N, Dp), jnp.bfloat16),
        jax.ShapeDtypeStruct((num_tiles, tile_b, Dp), jnp.float32),
    )

    # Advisory cost estimate (padded matmul flops, exp transcendentals).
    flops = 2 * N * Dp * Dp * 3 * (n_latents + 1)
    transcendentals = N * Dp * 3 * (n_latents + 1)
    bytes_accessed = (N * x_dim * 2                   # x (bf16)
                      + n_main * Dp * Dp * 2          # weights (bf16)
                      + n_main * Dp * 4               # biases (f32)
                      + n_latents * N * Dp * 2        # hs (bf16, lane-dense)
                      + B * Dp * 4)                   # per-sequence max (f32)

    # VMEM budget: double-buffered streams + resident weights + live f32 activations.
    vmem_est = (2 * tile_n * x_dim * 2
                + 2 * n_latents * tile_n * Dp * 2
                + 2 * tile_b * Dp * 4
                + 2 * (n_main * Dp * Dp * 2 + n_main * Dp * 4)
                + 8 * tile_n * Dp * 4)
    vmem_cap = (48 << 20) if v7plus else (96 << 20)
    vmem_limit = int(min(max(2 * vmem_est + (2 << 20), 16 << 20), vmem_cap))

    hs_all, hmax = pl.pallas_call(
        kernel,
        grid_spec=pltpu.PrefetchScalarGridSpec(
            num_scalar_prefetch=0,
            grid=(num_tiles,),
            in_specs=in_specs,
            out_specs=out_specs,
        ),
        out_shape=out_shape,
        compiler_params=pltpu.CompilerParams(
            dimension_semantics=("parallel",),
            vmem_limit_bytes=vmem_limit,
        ),
        cost_estimate=pl.CostEstimate(
            flops=flops,
            transcendentals=transcendentals,
            bytes_accessed=bytes_accessed,
        ),
    )(x_flat, w_main, b_main)

    # e_block off the hot loop: one tiny call over all B per-sequence max rows.
    m = hmax.reshape(B, Dp)                           # contiguous reshape
    e = pl.pallas_call(
        _make_e_kernel(e_dim, act_dtype),
        grid_spec=pltpu.PrefetchScalarGridSpec(
            num_scalar_prefetch=0,
            grid=(1,),
            in_specs=[pl.BlockSpec((B, Dp), lambda i: (0, 0)),
                      pl.BlockSpec((3, Dp, Dp), lambda i: (0, 0, 0)),
                      pl.BlockSpec((3, 1, Dp), lambda i: (0, 0, 0))],
            out_specs=pl.BlockSpec((B, e_dim), lambda i: (0, 0)),
        ),
        out_shape=jax.ShapeDtypeStruct((B, e_dim), jnp.float32),
        compiler_params=pltpu.CompilerParams(
            dimension_semantics=("arbitrary",),
            vmem_limit_bytes=32 << 20,
        ),
    )(m, w_e, b_e)

    hs = [hs_all[i, :, :h_dim] for i in range(n_latents)]   # (N, h_dim) bf16 each
    x_encoded = 0.0                                  # positional_encoding is None
    return x_encoded, hs, e


# --------------------------------------------------------------------------
# Pure-JAX f32 reference (for correctness check)
# --------------------------------------------------------------------------
def _ref_forward(x, flat_params, *, n_latents, x_dim, h_dim, hid_dim, e_dim):
    def block(h, ws, residual):
        w1, b1, w2, b2, w3, b3 = ws
        z = jax.nn.silu(h @ w1 + b1)
        z = jax.nn.silu(z @ w2 + b2)
        z = jax.nn.silu(z @ w3 + b3)
        return z + h if residual else z

    idx = 0
    def take6():
        nonlocal idx
        ws = flat_params[idx:idx + 6]
        idx += 6
        return ws

    in_ws = take6()
    blk_ws = [take6() for _ in range(n_latents)]
    e_ws = take6()

    B, S, _ = x.shape
    h = x.reshape(-1, x_dim)
    h = block(h, in_ws, False)
    hs = []
    for i in range(n_latents):
        h = block(h, blk_ws[i], True)
        hs.append(h)
    e = jnp.max(h.reshape(B, S, h_dim), axis=1)
    e = block(e, e_ws, False)
    return 0.0, hs, e


# --------------------------------------------------------------------------
# Main
# --------------------------------------------------------------------------
if __name__ == "__main__":
    # Small shapes; explicit tile_b=2 gives a 4-step grid so the pipeline /
    # weight residency / lane-dense output path are actually exercised.
    B, S = 8, 8
    n_latents = 3
    x_dim, h_dim, hid_dim, e_dim = 32, 64, 64, 32

    key = jax.random.PRNGKey(0)
    kx, kp = jax.random.split(key)

    x = jax.random.normal(kx, (B, S, x_dim), jnp.float32)
    params = init_encoder_params(kp, n_latents, x_dim, h_dim, hid_dim, e_dim)

    x_enc, hs, e = encoder_forward(
        x, params,
        n_latents=n_latents, x_dim=x_dim, h_dim=h_dim,
        hid_dim=hid_dim, e_dim=e_dim, tile_b=2)
    jax.block_until_ready(e)
    for h in hs:
        jax.block_until_ready(h)

    # Sanity check vs pure-JAX f32 reference. bf16 MXU operands, bf16 hs
    # writeback, bf16 activation carry (v6e/v7x) and the approximate EUP
    # reciprocal in sigmoid -> loosened tolerances.
    x_enc_r, hs_r, e_r = _ref_forward(
        x, params,
        n_latents=n_latents, x_dim=x_dim, h_dim=h_dim,
        hid_dim=hid_dim, e_dim=e_dim)
    assert x_enc == x_enc_r == 0.0
    tol = dict(atol=1e-1, rtol=1e-1)
    for a, b in zip(hs, hs_r):
        assert a.shape == (B * S, h_dim)
        assert jnp.allclose(a.astype(jnp.float32), b, **tol)
    assert e.shape == (B, e_dim)
    assert jnp.allclose(e, e_r, **tol)

    print("KERNEL_OK")
</pallas_src>

<mosaic_0001>
module attributes {stable_mosaic.version = 11 : i64} {
  func.func @kernel(%arg0: i32, %arg1: memref<16x32xbf16, #tpu.memory_space<vmem>>, %arg2: memref<12x128x128xbf16, #tpu.memory_space<vmem>>, %arg3: memref<12x1x128xf32, #tpu.memory_space<vmem>>, %arg4: memref<3x16x128xbf16, #tpu.memory_space<vmem>>, %arg5: memref<1x2x128xf32, #tpu.memory_space<vmem>>) attributes {dimension_semantics = [#tpu.dimension_semantics<parallel>], iteration_bounds = array<i64: 4>, scalar_prefetch = 0 : i64, scratch_operands = 0 : i64, tpu.core_type = #tpu.core_type<tc>, window_params = [{transform_indices = @transform_0, window_bounds = array<i64: 16, 32>}, {pipeline_mode = #tpu.pipeline_mode<synchronous>, transform_indices = @transform_1, window_bounds = array<i64: 12, 128, 128>}, {pipeline_mode = #tpu.pipeline_mode<synchronous>, transform_indices = @transform_2, window_bounds = array<i64: 12, 1, 128>}, {transform_indices = @transform_3, window_bounds = array<i64: 3, 16, 128>}, {transform_indices = @transform_4, window_bounds = array<i64: 1, 2, 128>}]} {
    %c0 = arith.constant 0 : index
    %c0_0 = arith.constant 0 : index
    %0 = vector.load %arg1[%c0, %c0_0] : memref<16x32xbf16, #tpu.memory_space<vmem>>, vector<16x32xbf16>
    %c0_1 = arith.constant 0 : index
    %c0_2 = arith.constant 0 : index
    %c0_3 = arith.constant 0 : index
    %1 = vector.load %arg2[%c0_1, %c0_2, %c0_3] : memref<12x128x128xbf16, #tpu.memory_space<vmem>>, vector<1x128x128xbf16>
    %2 = vector.shape_cast %1 : vector<1x128x128xbf16> to vector<128x128xbf16>
    %3 = vector.extract_strided_slice %2 {offsets = [0, 0], sizes = [32, 128], strides = [1, 1]} : vector<128x128xbf16> to vector<32x128xbf16>
    %cst = arith.constant dense<0.000000e+00> : vector<16x128xf32>
    %4 = tpu.matmul %0, %3, %cst {dimension_numbers = #tpu.dot_dimension_numbers<[1], [0], [0], [1], [0, 0, 1, 1], [], []>} : vector<16x32xbf16>, vector<32x128xbf16>, vector<16x128xf32> -> vector<16x128xf32>
    %c0_4 = arith.constant 0 : index
    %c0_5 = arith.constant 0 : index
    %c0_6 = arith.constant 0 : index
    %5 = vector.load %arg3[%c0_4, %c0_5, %c0_6] : memref<12x1x128xf32, #tpu.memory_space<vmem>>, vector<1x1x128xf32>
    %6 = vector.shape_cast %5 : vector<1x1x128xf32> to vector<1x128xf32>
    %7 = vector.broadcast %6 : vector<1x128xf32> to vector<16x128xf32>
    %8 = arith.addf %4, %7 : vector<16x128xf32>
    %cst_7 = arith.constant 0.000000e+00 : f32
    %9 = vector.broadcast %cst_7 : f32 to vector<16x128xf32>
    %10 = arith.subf %9, %8 : vector<16x128xf32>
    %11 = math.exp %10 : vector<16x128xf32>
    %cst_8 = arith.constant 1.000000e+00 : f32
    %12 = vector.broadcast %cst_8 : f32 to vector<16x128xf32>
    %13 = arith.addf %12, %11 : vector<16x128xf32>
    %14 = tpu.reciprocal %13 {approx = true} : vector<16x128xf32> -> vector<16x128xf32>
    %15 = arith.mulf %8, %14 : vector<16x128xf32>
    %16 = arith.truncf %15 : vector<16x128xf32> to vector<16x128xbf16>
    %c1 = arith.constant 1 : index
    %c0_9 = arith.constant 0 : index
    %c0_10 = arith.constant 0 : index
    %17 = vector.load %arg2[%c1, %c0_9, %c0_10] : memref<12x128x128xbf16, #tpu.memory_space<vmem>>, vector<1x128x128xbf16>
    %18 = vector.shape_cast %17 : vector<1x128x128xbf16> to vector<128x128xbf16>
    %cst_11 = arith.constant dense<0.000000e+00> : vector<16x128xf32>
    %19 = tpu.matmul %16, %18, %cst_11 {dimension_numbers = #tpu.dot_dimension_numbers<[1], [0], [0], [1], [0, 0, 1, 1], [], []>} : vector<16x128xbf16>, vector<128x128xbf16>, vector<16x128xf32> -> vector<16x128xf32>
    %c1_12 = arith.constant 1 : index
    %c0_13 = arith.constant 0 : index
    %c0_14 = arith.constant 0 : index
    %20 = vector.load %arg3[%c1_12, %c0_13, %c0_14] : memref<12x1x128xf32, #tpu.memory_space<vmem>>, vector<1x1x128xf32>
    %21 = vector.shape_cast %20 : vector<1x1x128xf32> to vector<1x128xf32>
    %22 = vector.broadcast %21 : vector<1x128xf32> to vector<16x128xf32>
    %23 = arith.addf %19, %22 : vector<16x128xf32>
    %cst_15 = arith.constant 0.000000e+00 : f32
    %24 = vector.broadcast %cst_15 : f32 to vector<16x128xf32>
    %25 = arith.subf %24, %23 : vector<16x128xf32>
    %26 = math.exp %25 : vector<16x128xf32>
    %cst_16 = arith.constant 1.000000e+00 : f32
    %27 = vector.broadcast %cst_16 : f32 to vector<16x128xf32>
    %28 = arith.addf %27, %26 : vector<16x128xf32>
    %29 = tpu.reciprocal %28 {approx = true} : vector<16x128xf32> -> vector<16x128xf32>
    %30 = arith.mulf %23, %29 : vector<16x128xf32>
    %31 = arith.truncf %30 : vector<16x128xf32> to vector<16x128xbf16>
    %c2 = arith.constant 2 : index
    %c0_17 = arith.constant 0 : index
    %c0_18 = arith.constant 0 : index
    %32 = vector.load %arg2[%c2, %c0_17, %c0_18] : memref<12x128x128xbf16, #tpu.memory_space<vmem>>, vector<1x128x128xbf16>
    %33 = vector.shape_cast %32 : vector<1x128x128xbf16> to vector<128x128xbf16>
    %cst_19 = arith.constant dense<0.000000e+00> : vector<16x128xf32>
    %34 = tpu.matmul %31, %33, %cst_19 {dimension_numbers = #tpu.dot_dimension_numbers<[1], [0], [0], [1], [0, 0, 1, 1], [], []>} : vector<16x128xbf16>, vector<128x128xbf16>, vector<16x128xf32> -> vector<16x128xf32>
    %c2_20 = arith.constant 2 : index
    %c0_21 = arith.constant 0 : index
    %c0_22 = arith.constant 0 : index
    %35 = vector.load %arg3[%c2_20, %c0_21, %c0_22] : memref<12x1x128xf32, #tpu.memory_space<vmem>>, vector<1x1x128xf32>
    %36 = vector.shape_cast %35 : vector<1x1x128xf32> to vector<1x128xf32>
    %37 = vector.broadcast %36 : vector<1x128xf32> to vector<16x128xf32>
    %38 = arith.addf %34, %37 : vector<16x128xf32>
    %cst_23 = arith.constant 0.000000e+00 : f32
    %39 = vector.broadcast %cst_23 : f32 to vector<16x128xf32>
    %40 = arith.subf %39, %38 : vector<16x128xf32>
    %41 = math.exp %40 : vector<16x128xf32>
    %cst_24 = arith.constant 1.000000e+00 : f32
    %42 = vector.broadcast %cst_24 : f32 to vector<16x128xf32>
    %43 = arith.addf %42, %41 : vector<16x128xf32>
    %44 = tpu.reciprocal %43 {approx = true} : vector<16x128xf32> -> vector<16x128xf32>
    %45 = arith.mulf %38, %44 : vector<16x128xf32>
    %46 = arith.truncf %45 : vector<16x128xf32> to vector<16x128xbf16>
    %47 = arith.extf %46 : vector<16x128xbf16> to vector<16x128xf32>
    %48 = arith.truncf %47 : vector<16x128xf32> to vector<16x128xbf16>
    %c3 = arith.constant 3 : index
    %c0_25 = arith.constant 0 : index
    %c0_26 = arith.constant 0 : index
    %49 = vector.load %arg2[%c3, %c0_25, %c0_26] : memref<12x128x128xbf16, #tpu.memory_space<vmem>>, vector<1x128x128xbf16>
    %50 = vector.shape_cast %49 : vector<1x128x128xbf16> to vector<128x128xbf16>
    %cst_27 = arith.constant dense<0.000000e+00> : vector<16x128xf32>
    %51 = tpu.matmul %48, %50, %cst_27 {dimension_numbers = #tpu.dot_dimension_numbers<[1], [0], [0], [1], [0, 0, 1, 1], [], []>} : vector<16x128xbf16>, vector<128x128xbf16>, vector<16x128xf32> -> vector<16x128xf32>
    %c3_28 = arith.constant 3 : index
    %c0_29 = arith.constant 0 : index
    %c0_30 = arith.constant 0 : index
    %52 = vector.load %arg3[%c3_28, %c0_29, %c0_30] : memref<12x1x128xf32, #tpu.memory_space<vmem>>, vector<1x1x128xf32>
    %53 = vector.shape_cast %52 : vector<1x1x128xf32> to vector<1x128xf32>
    %54 = vector.broadcast %53 : vector<1x128xf32> to vector<16x128xf32>
    %55 = arith.addf %51, %54 : vector<16x128xf32>
    %cst_31 = arith.constant 0.000000e+00 : f32
    %56 = vector.broadcast %cst_31 : f32 to vector<16x128xf32>
    %57 = arith.subf %56, %55 : vector<16x128xf32>
    %58 = math.exp %57 : vector<16x128xf32>
    %cst_32 = arith.constant 1.000000e+00 : f32
    %59 = vector.broadcast %cst_32 : f32 to vector<16x128xf32>
    %60 = arith.addf %59, %58 : vector<16x128xf32>
    %61 = tpu.reciprocal %60 {approx = true} : vector<16x128xf32> -> vector<16x128xf32>
    %62 = arith.mulf %55, %61 : vector<16x128xf32>
    %63 = arith.truncf %62 : vector<16x128xf32> to vector<16x128xbf16>
    %c4 = arith.constant 4 : index
    %c0_33 = arith.constant 0 : index
    %c0_34 = arith.constant 0 : index
    %64 = vector.load %arg2[%c4, %c0_33, %c0_34] : memref<12x128x128xbf16, #tpu.memory_space<vmem>>, vector<1x128x128xbf16>
    %65 = vector.shape_cast %64 : vector<1x128x128xbf16> to vector<128x128xbf16>
    %cst_35 = arith.constant dense<0.000000e+00> : vector<16x128xf32>
    %66 = tpu.matmul %63, %65, %cst_35 {dimension_numbers = #tpu.dot_dimension_numbers<[1], [0], [0], [1], [0, 0, 1, 1], [], []>} : vector<16x128xbf16>, vector<128x128xbf16>, vector<16x128xf32> -> vector<16x128xf32>
    %c4_36 = arith.constant 4 : index
    %c0_37 = arith.constant 0 : index
    %c0_38 = arith.constant 0 : index
    %67 = vector.load %arg3[%c4_36, %c0_37, %c0_38] : memref<12x1x128xf32, #tpu.memory_space<vmem>>, vector<1x1x128xf32>
    %68 = vector.shape_cast %67 : vector<1x1x128xf32> to vector<1x128xf32>
    %69 = vector.broadcast %68 : vector<1x128xf32> to vector<16x128xf32>
    %70 = arith.addf %66, %69 : vector<16x128xf32>
    %cst_39 = arith.constant 0.000000e+00 : f32
    %71 = vector.broadcast %cst_39 : f32 to vector<16x128xf32>
    %72 = arith.subf %71, %70 : vector<16x128xf32>
    %73 = math.exp %72 : vector<16x128xf32>
    %cst_40 = arith.constant 1.000000e+00 : f32
    %74 = vector.broadcast %cst_40 : f32 to vector<16x128xf32>
    %75 = arith.addf %74, %73 : vector<16x128xf32>
    %76 = tpu.reciprocal %75 {approx = true} : vector<16x128xf32> -> vector<16x128xf32>
    %77 = arith.mulf %70, %76 : vector<16x128xf32>
    %78 = arith.truncf %77 : vector<16x128xf32> to vector<16x128xbf16>
    %c5 = arith.constant 5 : index
    %c0_41 = arith.constant 0 : index
    %c0_42 = arith.constant 0 : index
    %79 = vector.load %arg2[%c5, %c0_41, %c0_42] : memref<12x128x128xbf16, #tpu.memory_space<vmem>>, vector<1x128x128xbf16>
    %80 = vector.shape_cast %79 : vector<1x128x128xbf16> to vector<128x128xbf16>
    %cst_43 = arith.constant dense<0.000000e+00> : vector<16x128xf32>
    %81 = tpu.matmul %78, %80, %cst_43 {dimension_numbers = #tpu.dot_dimension_numbers<[1], [0], [0], [1], [0, 0, 1, 1], [], []>} : vector<16x128xbf16>, vector<128x128xbf16>, vector<16x128xf32> -> vector<16x128xf32>
    %c5_44 = arith.constant 5 : index
    %c0_45 = arith.constant 0 : index
    %c0_46 = arith.constant 0 : index
    %82 = vector.load %arg3[%c5_44, %c0_45, %c0_46] : memref<12x1x128xf32, #tpu.memory_space<vmem>>, vector<1x1x128xf32>
    %83 = vector.shape_cast %82 : vector<1x1x128xf32> to vector<1x128xf32>
    %84 = vector.broadcast %83 : vector<1x128xf32> to vector<16x128xf32>
    %85 = arith.addf %81, %84 : vector<16x128xf32>
    %cst_47 = arith.constant 0.000000e+00 : f32
    %86 = vector.broadcast %cst_47 : f32 to vector<16x128xf32>
    %87 = arith.subf %86, %85 : vector<16x128xf32>
    %88 = math.exp %87 : vector<16x128xf32>
    %cst_48 = arith.constant 1.000000e+00 : f32
    %89 = vector.broadcast %cst_48 : f32 to vector<16x128xf32>
    %90 = arith.addf %89, %88 : vector<16x128xf32>
    %91 = tpu.reciprocal %90 {approx = true} : vector<16x128xf32> -> vector<16x128xf32>
    %92 = arith.mulf %85, %91 : vector<16x128xf32>
    %93 = arith.truncf %92 : vector<16x128xf32> to vector<16x128xbf16>
    %94 = arith.extf %93 : vector<16x128xbf16> to vector<16x128xf32>
    %95 = arith.addf %47, %94 : vector<16x128xf32>
    %96 = arith.truncf %95 : vector<16x128xf32> to vector<16x128xbf16>
    %c0_49 = arith.constant 0 : index
    %c0_50 = arith.constant 0 : index
    %c0_51 = arith.constant 0 : index
    %97 = vector.load %arg4[%c0_49, %c0_50, %c0_51] : memref<3x16x128xbf16, #tpu.memory_space<vmem>>, vector<1x16x128xbf16>
    %98 = vector.shape_cast %97 : vector<1x16x128xbf16> to vector<16x128xbf16>
    %99 = vector.shape_cast %96 : vector<16x128xbf16> to vector<1x16x128xbf16>
    tpu.vector_store %arg4[%c0_49, %c0_50, %c0_51], %99 {strides = array<i32>} : memref<3x16x128xbf16, #tpu.memory_space<vmem>>, vector<1x16x128xbf16>,
    %100 = arith.truncf %95 : vector<16x128xf32> to vector<16x128xbf16>
    %c6 = arith.constant 6 : index
    %c0_52 = arith.constant 0 : index
    %c0_53 = arith.constant 0 : index
    %101 = vector.load %arg2[%c6, %c0_52, %c0_53] : memref<12x128x128xbf16, #tpu.memory_space<vmem>>, vector<1x128x128xbf16>
    %102 = vector.shape_cast %101 : vector<1x128x128xbf16> to vector<128x128xbf16>
    %cst_54 = arith.constant dense<0.000000e+00> : vector<16x128xf32>
    %103 = tpu.matmul %100, %102, %cst_54 {dimension_numbers = #tpu.dot_dimension_numbers<[1], [0], [0], [1], [0, 0, 1, 1], [], []>} : vector<16x128xbf16>, vector<128x128xbf16>, vector<16x128xf32> -> vector<16x128xf32>
    %c6_55 = arith.constant 6 : index
    %c0_56 = arith.constant 0 : index
    %c0_57 = arith.constant 0 : index
    %104 = vector.load %arg3[%c6_55, %c0_56, %c0_57] : memref<12x1x128xf32, #tpu.memory_space<vmem>>, vector<1x1x128xf32>
    %105 = vector.shape_cast %104 : vector<1x1x128xf32> to vector<1x128xf32>
    %106 = vector.broadcast %105 : vector<1x128xf32> to vector<16x128xf32>
    %107 = arith.addf %103, %106 : vector<16x128xf32>
    %cst_58 = arith.constant 0.000000e+00 : f32
    %108 = vector.broadcast %cst_58 : f32 to vector<16x128xf32>
    %109 = arith.subf %108, %107 : vector<16x128xf32>
    %110 = math.exp %109 : vector<16x128xf32>
    %cst_59 = arith.constant 1.000000e+00 : f32
    %111 = vector.broadcast %cst_59 : f32 to vector<16x128xf32>
    %112 = arith.addf %111, %110 : vector<16x128xf32>
    %113 = tpu.reciprocal %112 {approx = true} : vector<16x128xf32> -> vector<16x128xf32>
    %114 = arith.mulf %107, %113 : vector<16x128xf32>
    %115 = arith.truncf %114 : vector<16x128xf32> to vector<16x128xbf16>
    %c7 = arith.constant 7 : index
    %c0_60 = arith.constant 0 : index
    %c0_61 = arith.constant 0 : index
    %116 = vector.load %arg2[%c7, %c0_60, %c0_61] : memref<12x128x128xbf16, #tpu.memory_space<vmem>>, vector<1x128x128xbf16>
    %117 = vector.shape_cast %116 : vector<1x128x128xbf16> to vector<128x128xbf16>
    %cst_62 = arith.constant dense<0.000000e+00> : vector<16x128xf32>
    %118 = tpu.matmul %115, %117, %cst_62 {dimension_numbers = #tpu.dot_dimension_numbers<[1], [0], [0], [1], [0, 0, 1, 1], [], []>} : vector<16x128xbf16>, vector<128x128xbf16>, vector<16x128xf32> -> vector<16x128xf32>
    %c7_63 = arith.constant 7 : index
    %c0_64 = arith.constant 0 : index
    %c0_65 = arith.constant 0 : index
    %119 = vector.load %arg3[%c7_63, %c0_64, %c0_65] : memref<12x1x128xf32, #tpu.memory_space<vmem>>, vector<1x1x128xf32>
    %120 = vector.shape_cast %119 : vector<1x1x128xf32> to vector<1x128xf32>
    %121 = vector.broadcast %120 : vector<1x128xf32> to vector<16x128xf32>
    %122 = arith.addf %118, %121 : vector<16x128xf32>
    %cst_66 = arith.constant 0.000000e+00 : f32
    %123 = vector.broadcast %cst_66 : f32 to vector<16x128xf32>
    %124 = arith.subf %123, %122 : vector<16x128xf32>
    %125 = math.exp %124 : vector<16x128xf32>
    %cst_67 = arith.constant 1.000000e+00 : f32
    %126 = vector.broadcast %cst_67 : f32 to vector<16x128xf32>
    %127 = arith.addf %126, %125 : vector<16x128xf32>
    %128 = tpu.reciprocal %127 {approx = true} : vector<16x128xf32> -> vector<16x128xf32>
    %129 = arith.mulf %122, %128 : vector<16x128xf32>
    %130 = arith.truncf %129 : vector<16x128xf32> to vector<16x128xbf16>
    %c8 = arith.constant 8 : index
    %c0_68 = arith.constant 0 : index
    %c0_69 = arith.constant 0 : index
    %131 = vector.load %arg2[%c8, %c0_68, %c0_69] : memref<12x128x128xbf16, #tpu.memory_space<vmem>>, vector<1x128x128xbf16>
    %132 = vector.shape_cast %131 : vector<1x128x128xbf16> to vector<128x128xbf16>
    %cst_70 = arith.constant dense<0.000000e+00> : vector<16x128xf32>
    %133 = tpu.matmul %130, %132, %cst_70 {dimension_numbers = #tpu.dot_dimension_numbers<[1], [0], [0], [1], [0, 0, 1, 1], [], []>} : vector<16x128xbf16>, vector<128x128xbf16>, vector<16x128xf32> -> vector<16x128xf32>
    %c8_71 = arith.constant 8 : index
    %c0_72 = arith.constant 0 : index
    %c0_73 = arith.constant 0 : index
    %134 = vector.load %arg3[%c8_71, %c0_72, %c0_73] : memref<12x1x128xf32, #tpu.memory_space<vmem>>, vector<1x1x128xf32>
    %135 = vector.shape_cast %134 : vector<1x1x128xf32> to vector<1x128xf32>
    %136 = vector.broadcast %135 : vector<1x128xf32> to vector<16x128xf32>
    %137 = arith.addf %133, %136 : vector<16x128xf32>
    %cst_74 = arith.constant 0.000000e+00 : f32
    %138 = vector.broadcast %cst_74 : f32 to vector<16x128xf32>
    %139 = arith.subf %138, %137 : vector<16x128xf32>
    %140 = math.exp %139 : vector<16x128xf32>
    %cst_75 = arith.constant 1.000000e+00 : f32
    %141 = vector.broadcast %cst_75 : f32 to vector<16x128xf32>
    %142 = arith.addf %141, %140 : vector<16x128xf32>
    %143 = tpu.reciprocal %142 {approx = true} : vector<16x128xf32> -> vector<16x128xf32>
    %144 = arith.mulf %137, %143 : vector<16x128xf32>
    %145 = arith.truncf %144 : vector<16x128xf32> to vector<16x128xbf16>
    %146 = arith.extf %145 : vector<16x128xbf16> to vector<16x128xf32>
    %147 = arith.addf %95, %146 : vector<16x128xf32>
    %148 = arith.truncf %147 : vector<16x128xf32> to vector<16x128xbf16>
    %c1_76 = arith.constant 1 : index
    %c0_77 = arith.constant 0 : index
    %c0_78 = arith.constant 0 : index
    %149 = vector.load %arg4[%c1_76, %c0_77, %c0_78] : memref<3x16x128xbf16, #tpu.memory_space<vmem>>, vector<1x16x128xbf16>
    %150 = vector.shape_cast %149 : vector<1x16x128xbf16> to vector<16x128xbf16>
    %151 = vector.shape_cast %148 : vector<16x128xbf16> to vector<1x16x128xbf16>
    tpu.vector_store %arg4[%c1_76, %c0_77, %c0_78], %151 {strides = array<i32>} : memref<3x16x128xbf16, #tpu.memory_space<vmem>>, vector<1x16x128xbf16>,
    %152 = arith.truncf %147 : vector<16x128xf32> to vector<16x128xbf16>
    %c9 = arith.constant 9 : index
    %c0_79 = arith.constant 0 : index
    %c0_80 = arith.constant 0 : index
    %153 = vector.load %arg2[%c9, %c0_79, %c0_80] : memref<12x128x128xbf16, #tpu.memory_space<vmem>>, vector<1x128x128xbf16>
    %154 = vector.shape_cast %153 : vector<1x128x128xbf16> to vector<128x128xbf16>
    %cst_81 = arith.constant dense<0.000000e+00> : vector<16x128xf32>
    %155 = tpu.matmul %152, %154, %cst_81 {dimension_numbers = #tpu.dot_dimension_numbers<[1], [0], [0], [1], [0, 0, 1, 1], [], []>} : vector<16x128xbf16>, vector<128x128xbf16>, vector<16x128xf32> -> vector<16x128xf32>
    %c9_82 = arith.constant 9 : index
    %c0_83 = arith.constant 0 : index
    %c0_84 = arith.constant 0 : index
    %156 = vector.load %arg3[%c9_82, %c0_83, %c0_84] : memref<12x1x128xf32, #tpu.memory_space<vmem>>, vector<1x1x128xf32>
    %157 = vector.shape_cast %156 : vector<1x1x128xf32> to vector<1x128xf32>
    %158 = vector.broadcast %157 : vector<1x128xf32> to vector<16x128xf32>
    %159 = arith.addf %155, %158 : vector<16x128xf32>
    %cst_85 = arith.constant 0.000000e+00 : f32
    %160 = vector.broadcast %cst_85 : f32 to vector<16x128xf32>
    %161 = arith.subf %160, %159 : vector<16x128xf32>
    %162 = math.exp %161 : vector<16x128xf32>
    %cst_86 = arith.constant 1.000000e+00 : f32
    %163 = vector.broadcast %cst_86 : f32 to vector<16x128xf32>
    %164 = arith.addf %163, %162 : vector<16x128xf32>
    %165 = tpu.reciprocal %164 {approx = true} : vector<16x128xf32> -> vector<16x128xf32>
    %166 = arith.mulf %159, %165 : vector<16x128xf32>
    %167 = arith.truncf %166 : vector<16x128xf32> to vector<16x128xbf16>
    %c10 = arith.constant 10 : index
    %c0_87 = arith.constant 0 : index
    %c0_88 = arith.constant 0 : index
    %168 = vector.load %arg2[%c10, %c0_87, %c0_88] : memref<12x128x128xbf16, #tpu.memory_space<vmem>>, vector<1x128x128xbf16>
    %169 = vector.shape_cast %168 : vector<1x128x128xbf16> to vector<128x128xbf16>
    %cst_89 = arith.constant dense<0.000000e+00> : vector<16x128xf32>
    %170 = tpu.matmul %167, %169, %cst_89 {dimension_numbers = #tpu.dot_dimension_numbers<[1], [0], [0], [1], [0, 0, 1, 1], [], []>} : vector<16x128xbf16>, vector<128x128xbf16>, vector<16x128xf32> -> vector<16x128xf32>
    %c10_90 = arith.constant 10 : index
    %c0_91 = arith.constant 0 : index
    %c0_92 = arith.constant 0 : index
    %171 = vector.load %arg3[%c10_90, %c0_91, %c0_92] : memref<12x1x128xf32, #tpu.memory_space<vmem>>, vector<1x1x128xf32>
    %172 = vector.shape_cast %171 : vector<1x1x128xf32> to vector<1x128xf32>
    %173 = vector.broadcast %172 : vector<1x128xf32> to vector<16x128xf32>
    %174 = arith.addf %170, %173 : vector<16x128xf32>
    %cst_93 = arith.constant 0.000000e+00 : f32
    %175 = vector.broadcast %cst_93 : f32 to vector<16x128xf32>
    %176 = arith.subf %175, %174 : vector<16x128xf32>
    %177 = math.exp %176 : vector<16x128xf32>
    %cst_94 = arith.constant 1.000000e+00 : f32
    %178 = vector.broadcast %cst_94 : f32 to vector<16x128xf32>
    %179 = arith.addf %178, %177 : vector<16x128xf32>
    %180 = tpu.reciprocal %179 {approx = true} : vector<16x128xf32> -> vector<16x128xf32>
    %181 = arith.mulf %174, %180 : vector<16x128xf32>
    %182 = arith.truncf %181 : vector<16x128xf32> to vector<16x128xbf16>
    %c11 = arith.constant 11 : index
    %c0_95 = arith.constant 0 : index
    %c0_96 = arith.constant 0 : index
    %183 = vector.load %arg2[%c11, %c0_95, %c0_96] : memref<12x128x128xbf16, #tpu.memory_space<vmem>>, vector<1x128x128xbf16>
    %184 = vector.shape_cast %183 : vector<1x128x128xbf16> to vector<128x128xbf16>
    %cst_97 = arith.constant dense<0.000000e+00> : vector<16x128xf32>
    %185 = tpu.matmul %182, %184, %cst_97 {dimension_numbers = #tpu.dot_dimension_numbers<[1], [0], [0], [1], [0, 0, 1, 1], [], []>} : vector<16x128xbf16>, vector<128x128xbf16>, vector<16x128xf32> -> vector<16x128xf32>
    %c11_98 = arith.constant 11 : index
    %c0_99 = arith.constant 0 : index
    %c0_100 = arith.constant 0 : index
    %186 = vector.load %arg3[%c11_98, %c0_99, %c0_100] : memref<12x1x128xf32, #tpu.memory_space<vmem>>, vector<1x1x128xf32>
    %187 = vector.shape_cast %186 : vector<1x1x128xf32> to vector<1x128xf32>
    %188 = vector.broadcast %187 : vector<1x128xf32> to vector<16x128xf32>
    %189 = arith.addf %185, %188 : vector<16x128xf32>
    %cst_101 = arith.constant 0.000000e+00 : f32
    %190 = vector.broadcast %cst_101 : f32 to vector<16x128xf32>
    %191 = arith.subf %190, %189 : vector<16x128xf32>
    %192 = math.exp %191 : vector<16x128xf32>
    %cst_102 = arith.constant 1.000000e+00 : f32
    %193 = vector.broadcast %cst_102 : f32 to vector<16x128xf32>
    %194 = arith.addf %193, %192 : vector<16x128xf32>
    %195 = tpu.reciprocal %194 {approx = true} : vector<16x128xf32> -> vector<16x128xf32>
    %196 = arith.mulf %189, %195 : vector<16x128xf32>
    %197 = arith.truncf %196 : vector<16x128xf32> to vector<16x128xbf16>
    %198 = arith.extf %197 : vector<16x128xbf16> to vector<16x128xf32>
    %199 = arith.addf %147, %198 : vector<16x128xf32>
    %200 = arith.truncf %199 : vector<16x128xf32> to vector<16x128xbf16>
    %c2_103 = arith.constant 2 : index
    %c0_104 = arith.constant 0 : index
    %c0_105 = arith.constant 0 : index
    %201 = vector.load %arg4[%c2_103, %c0_104, %c0_105] : memref<3x16x128xbf16, #tpu.memory_space<vmem>>, vector<1x16x128xbf16>
    %202 = vector.shape_cast %201 : vector<1x16x128xbf16> to vector<16x128xbf16>
    %203 = vector.shape_cast %200 : vector<16x128xbf16> to vector<1x16x128xbf16>
    tpu.vector_store %arg4[%c2_103, %c0_104, %c0_105], %203 {strides = array<i32>} : memref<3x16x128xbf16, #tpu.memory_space<vmem>>, vector<1x16x128xbf16>,
    %204 = vector.shape_cast %199 : vector<16x128xf32> to vector<2x8x128xf32>
    %cst_106 = arith.constant dense<0xFF800000> : vector<2x128xf32>
    %205 = vector.multi_reduction <maximumf>, %204, %cst_106 [1] : vector<2x8x128xf32> to vector<2x128xf32>
    %c0_107 = arith.constant 0 : index
    %c0_108 = arith.constant 0 : index
    %c0_109 = arith.constant 0 : index
    %206 = vector.load %arg5[%c0_107, %c0_108, %c0_109] : memref<1x2x128xf32, #tpu.memory_space<vmem>>, vector<1x2x128xf32>
    %207 = vector.shape_cast %206 : vector<1x2x128xf32> to vector<2x128xf32>
    %208 = vector.shape_cast %205 : vector<2x128xf32> to vector<1x2x128xf32>
    tpu.vector_store %arg5[%c0_107, %c0_108, %c0_109], %208 {strides = array<i32>} : memref<1x2x128xf32, #tpu.memory_space<vmem>>, vector<1x2x128xf32>,
    return
  }
  func.func @transform_0(%arg0: i32) -> (i32, i32) {
    %c0_i32 = arith.constant 0 : i32
    %c0_i32_0 = arith.constant 0 : i32
    return %arg0, %c0_i32 : i32, i32
  }
  func.func @transform_1(%arg0: i32) -> (i32, i32, i32) {
    %c0_i32 = arith.constant 0 : i32
    %c0_i32_0 = arith.constant 0 : i32
    %c0_i32_1 = arith.constant 0 : i32
    %c0_i32_2 = arith.constant 0 : i32
    return %c0_i32, %c0_i32_0, %c0_i32_1 : i32, i32, i32
  }
  func.func @transform_2(%arg0: i32) -> (i32, i32, i32) {
    %c0_i32 = arith.constant 0 : i32
    %c0_i32_0 = arith.constant 0 : i32
    %c0_i32_1 = arith.constant 0 : i32
    %c0_i32_2 = arith.constant 0 : i32
    return %c0_i32, %c0_i32_0, %c0_i32_1 : i32, i32, i32
  }
  func.func @transform_3(%arg0: i32) -> (i32, i32, i32) {
    %c0_i32 = arith.constant 0 : i32
    %c0_i32_0 = arith.constant 0 : i32
    %c0_i32_1 = arith.constant 0 : i32
    return %c0_i32, %arg0, %c0_i32_0 : i32, i32, i32
  }
  func.func @transform_4(%arg0: i32) -> (i32, i32, i32) {
    %c0_i32 = arith.constant 0 : i32
    %c0_i32_0 = arith.constant 0 : i32
    %c0_i32_1 = arith.constant 0 : i32
    return %arg0, %c0_i32, %c0_i32_0 : i32, i32, i32
  }
}

</mosaic_0001>

<llo_original>
// kernel: tpu_custom_call.1
$region0: #{tpu_custom_call.1}
  #allocation0 [shape = 'u32[]', space=smem, size = 0x4, offset = 0x4, fixed_abs, tag = 'smem constant byte address 0x4 - core index']
  #allocation1 [shape = 'u32[144,128]{1,0:T(1,128)}', space=vmem, size = 0x12000, scoped, tag = 'internal scratch']
  #allocation8 [shape = 's32[]', space=sflag, size = 0x4, offset = 0, fixed_abs, tag = 'sflag constant byte address 0x0 - dummy sync flag']
  %s0 = inlined_call_operand.vmem [shape: bf16[64,32], index: 0, kind: input, shape index: {}]
  %s1 = inlined_call_operand.hbm [shape: bf16[12,128,128], index: 1, kind: input, shape index: {}]
  %s2 = inlined_call_operand.vmem [shape: f32[12,1,128], index: 2, kind: input, shape index: {}]
  %s3 = inlined_call_operand.hbm [shape: bf16[3,64,128], index: 3, kind: output, shape index: {0}]
  %s4 = inlined_call_operand.hbm [shape: f32[4,2,128], index: 4, kind: output, shape index: {1}]
  %5 = xla_tuple %s3, %s4
  %s6 = sld [smem:[#allocation0]]
  $region57: #{tpu_custom_call.1} parent=0
    _
  %s8 = ssub.s32 1, %s6
  %s9 = scalar_select 0, %s8, %s6
  $region1: #{tpu_custom_call.1} parent=0
    #allocation2 [shape = 'u8[393216]{0}', space=vmem, size = 0x60000, scoped, tag = 'input window, operand 1, single buffered']
    #allocation3 [shape = 's32[2]{0}', space=sflag, size = 0x8, scoped, tag = 'scoped memory for tpu_custom_call.1']
    #allocation4 [shape = 's32[2]{0}', space=sflag, size = 0x8, scoped, tag = 'scoped memory for tpu_custom_call.1']
    #allocation5 [shape = 'u8[24576]{0}', space=vmem, size = 0x6000, scoped, tag = 'output window, operand 0']
    #allocation6 [shape = 'u8[2048]{0}', space=vmem, size = 0x800, scoped, tag = 'output window, operand 1']
    #allocation7 [shape = 's32[2]{0}', space=sflag, size = 0x8, scoped, tag = 'scoped memory for tpu_custom_call.1']
    %10 = vsyncpa [#allocation3], 0
    %11 = vsyncpa [#allocation4], 0
    %s12 = scalar_lea.sflag [#allocation4], 1
    %13 = vsyncpa %s12, 0
    %14 = vsyncpa [#allocation7], 0
    %s15 = scalar_lea.sflag [#allocation7], 1
    %16 = vsyncpa %s15, 0
    loop: start=0, step=1, limit=6
    $region2: #{tpu_custom_call.1} parent=1 // loop_pre_header
      _
    $region3: #{tpu_custom_call.1} parent=1 // loop_header
      %s18 = sphi 0, %s22
      %p19 = scmp.ge.s32.totalorder %s18, 6
      %s28 = sphi 0, %s30
      %s31 = sphi 0, %s28
      %s32 = sphi 0, %s31
      %s48 = sphi 0, %s32
      %s52 = sphi 0, %s52
      %s54 = sphi 0, %s52
      %s55 = sphi 0, %s54
      %s69 = sphi 0, %s55
      %s73 = sphi 0, %s73
      %s75 = sphi 0, %s73
      %s76 = sphi 0, %s75
      %s90 = sphi 0, %s76
      %s96 = sphi 0, %s98
      %s99 = sphi 0, %s96
      %s100 = sphi 0, %s99
      %s116 = sphi 0, %s100
      %s122 = sphi 0, %s124
      %s125 = sphi 0, %s122
      %s126 = sphi 0, %s125
      %s142 = sphi 0, %s126
    $region4: #{tpu_custom_call.1} parent=1 // loop_header_branch
      %21 = sbr.rel (%p19) target = $region8
    $region5: #{tpu_custom_call.1} parent=1 // loop_body
      %s23 = ssub.s32 %s18, 1
      %s24 = ssub.s32 %s18, 2
      %s25 = sadd.s32 %s18, 1
      %s26 = ssub.s32 %s18, %s25
      %p27 = scmp.eq.s32.totalorder %s26, 0
      %s29 = sadd.s32 %s28, 1
      %s30 = scalar_select %p27, %s28, %s29
      %p33 = pneg %p27
      %p34 = scmp.eq.s32.totalorder %s18, 3
      %p35 = por %p33, %p34
      %p36 = scmp.ne.s32.totalorder %s28, %s31
      %p37 = scmp.eq.s32.totalorder %s18, 0
      %p38 = por %p36, %p37
      %p39 = scmp.ne.s32.totalorder %s28, %s31
      %p40 = scmp.eq.s32.totalorder %s23, 3
      %p41 = por %p39, %p40
      %p42 = scmp.ne.s32.totalorder %s31, %s32
      %p43 = scmp.eq.s32.totalorder %s23, 0
      %p44 = por %p42, %p43
      %p45 = scmp.ne.s32.totalorder %s31, %s32
      %p46 = scmp.eq.s32.totalorder %s24, 3
      %p47 = por %p45, %p46
      %p49 = scmp.ne.s32.totalorder %s32, %s48
      %p50 = scmp.eq.s32.totalorder %s24, 0
      %p51 = por %p49, %p50
      %s53 = sadd.s32 %s52, 1
      %p56 = scmp.eq.s32.totalorder %s18, 3
      %p57 = scmp.ne.s32.totalorder %s52, %s54
      %p58 = scmp.eq.s32.totalorder %s18, 0
      %p59 = por %p57, %p58
      %p60 = scmp.ne.s32.totalorder %s52, %s54
      %p61 = scmp.eq.s32.totalorder %s23, 3
      %p62 = por %p60, %p61
      %p63 = scmp.ne.s32.totalorder %s54, %s55
      %p64 = scmp.eq.s32.totalorder %s23, 0
      %p65 = por %p63, %p64
      %p66 = scmp.ne.s32.totalorder %s54, %s55
      %p67 = scmp.eq.s32.totalorder %s24, 3
      %p68 = por %p66, %p67
      %p70 = scmp.ne.s32.totalorder %s55, %s69
      %p71 = scmp.eq.s32.totalorder %s24, 0
      %p72 = por %p70, %p71
      %s74 = sadd.s32 %s73, 1
      %p77 = scmp.eq.s32.totalorder %s18, 3
      %p78 = scmp.ne.s32.totalorder %s73, %s75
      %p79 = scmp.eq.s32.totalorder %s18, 0
      %p80 = por %p78, %p79
      %p81 = scmp.ne.s32.totalorder %s73, %s75
      %p82 = scmp.eq.s32.totalorder %s23, 3
      %p83 = por %p81, %p82
      %p84 = scmp.ne.s32.totalorder %s75, %s76
      %p85 = scmp.eq.s32.totalorder %s23, 0
      %p86 = por %p84, %p85
      %p87 = scmp.ne.s32.totalorder %s75, %s76
      %p88 = scmp.eq.s32.totalorder %s24, 3
      %p89 = por %p87, %p88
      %p91 = scmp.ne.s32.totalorder %s76, %s90
      %p92 = scmp.eq.s32.totalorder %s24, 0
      %p93 = por %p91, %p92
      %s94 = ssub.s32 %s18, %s25
      %p95 = scmp.eq.s32.totalorder %s94, 0
      %s97 = sadd.s32 %s96, 1
      %s98 = scalar_select %p95, %s96, %s97
      %p101 = pneg %p95
      %p102 = scmp.eq.s32.totalorder %s18, 3
      %p103 = por %p101, %p102
      %p104 = scmp.ne.s32.totalorder %s96, %s99
      %p105 = scmp.eq.s32.totalorder %s18, 0
      %p106 = por %p104, %p105
      %p107 = scmp.ne.s32.totalorder %s96, %s99
      %p108 = scmp.eq.s32.totalorder %s23, 3
      %p109 = por %p107, %p108
      %p110 = scmp.ne.s32.totalorder %s99, %s100
      %p111 = scmp.eq.s32.totalorder %s23, 0
      %p112 = por %p110, %p111
      %p113 = scmp.ne.s32.totalorder %s99, %s100
      %p114 = scmp.eq.s32.totalorder %s24, 3
      %p115 = por %p113, %p114
      %p117 = scmp.ne.s32.totalorder %s100, %s116
      %p118 = scmp.eq.s32.totalorder %s24, 0
      %p119 = por %p117, %p118
      %s120 = ssub.s32 %s18, %s25
      %p121 = scmp.eq.s32.totalorder %s120, 0
      %s123 = sadd.s32 %s122, 1
      %s124 = scalar_select %p121, %s122, %s123
      %p127 = pneg %p121
      %p128 = scmp.eq.s32.totalorder %s18, 3
      %p129 = por %p127, %p128
      %p130 = scmp.ne.s32.totalorder %s122, %s125
      %p131 = scmp.eq.s32.totalorder %s18, 0
      %p132 = por %p130, %p131
      %p133 = scmp.ne.s32.totalorder %s122, %s125
      %p134 = scmp.eq.s32.totalorder %s23, 3
      %p135 = por %p133, %p134
      %p136 = scmp.ne.s32.totalorder %s125, %s126
      %p137 = scmp.eq.s32.totalorder %s23, 0
      %p138 = por %p136, %p137
      %p139 = scmp.ne.s32.totalorder %s125, %s126
      %p140 = scmp.eq.s32.totalorder %s24, 3
      %p141 = por %p139, %p140
      %p143 = scmp.ne.s32.totalorder %s126, %s142
      %p144 = scmp.eq.s32.totalorder %s24, 0
      %p145 = por %p143, %p144
      %p146 = scmp.le.s32.totalorder 1, %s18
      %p147 = scmp.lt.s32.totalorder %s18, 5
      %p148 = pnand %p146, %p147
      %p149 = pneg %p148
      // Predicated region
      $region9: #{tpu_custom_call.1} parent=5 // pred_check
        _
      $region10: #{tpu_custom_call.1} parent=5 // pred_check_branch
        %151 = sbr.rel (%p148) target = $region12
      $region11: #{tpu_custom_call.1} parent=5 // pred_region
        %s152 = ssub.s32 %s18, 1
        // Predicated region
        $region13: #{tpu_custom_call.1} parent=11 // pred_check
          %p153 = pneg %p65
        $region14: #{tpu_custom_call.1} parent=11 // pred_check_branch
          %155 = sbr.rel (%p153) target = $region16
        $region15: #{tpu_custom_call.1} parent=11 // pred_region
          %s157 = ssub.s32 12288, 12288
          %158 = vsyncadd [#allocation3], %s157
          %s159 = sshll.u32 [#allocation2], 4
          %s160 = int_to_ptr.vmem [resolvable:$true] %s159
          %165 = dma.hbm_to_vmem [thread:$0]  %s1, 12288, %s160, [#allocation3], 64, 64, 4
        $region16: #{tpu_custom_call.1} parent=11 // pred_fallthru
          _
        // Predicated region
        $region17: #{tpu_custom_call.1} parent=11 // pred_check
          %p166 = pneg %p86
        $region18: #{tpu_custom_call.1} parent=11 // pred_check_branch
          %168 = sbr.rel (%p166) target = $region20
        $region19: #{tpu_custom_call.1} parent=11 // pred_region
          _
        $region20: #{tpu_custom_call.1} parent=11 // pred_fallthru
          _
      $region12: #{tpu_custom_call.1} parent=5 // pred_fallthru
        _
      %p169 = scmp.lt.s32.totalorder %s18, 4
      // Predicated region
      $region21: #{tpu_custom_call.1} parent=5 // pred_check
        %p170 = pneg %p169
      $region22: #{tpu_custom_call.1} parent=5 // pred_check_branch
        %172 = sbr.rel (%p170) target = $region24
      $region23: #{tpu_custom_call.1} parent=5 // pred_region
        // Predicated region
        $region25: #{tpu_custom_call.1} parent=23 // pred_check
          %p173 = pneg %p38
        $region26: #{tpu_custom_call.1} parent=23 // pred_check_branch
          %175 = sbr.rel (%p173) target = $region28
        $region27: #{tpu_custom_call.1} parent=23 // pred_region
          %s176 = smul.u32 2, %s18
          %p177 = scmp.lt.s32.totalorder %s176, 7
          %s178 = scalar_select %p177, %s176, 7
          %s179 = smul.addr %s178, 4
          %s180 = scalar_lea.vmem %s0, %s179
          %s181 = smul.u32 2, %s18
        $region28: #{tpu_custom_call.1} parent=23 // pred_fallthru
          _
      $region24: #{tpu_custom_call.1} parent=5 // pred_fallthru
        _
      %p182 = scmp.le.s32.totalorder 1, %s18
      %p183 = scmp.lt.s32.totalorder %s18, 5
      %p184 = pnand %p182, %p183
      %p185 = pneg %p184
      // Predicated region
      $region29: #{tpu_custom_call.1} parent=5 // pred_check
        _
      $region30: #{tpu_custom_call.1} parent=5 // pred_check_branch
        %187 = sbr.rel (%p184) target = $region32
      $region31: #{tpu_custom_call.1} parent=5 // pred_region
        %s188 = ssub.s32 %s18, 1
        // Predicated region
        $region33: #{tpu_custom_call.1} parent=31 // pred_check
          %p189 = pneg %p65
        $region34: #{tpu_custom_call.1} parent=31 // pred_check_branch
          %191 = sbr.rel (%p189) target = $region36
        $region35: #{tpu_custom_call.1} parent=31 // pred_region
          %192 = dma.done [#allocation3], 12288
        $region36: #{tpu_custom_call.1} parent=31 // pred_fallthru
          _
        %s193 = smul.u32 2, %s23
        %p194 = scmp.lt.s32.totalorder %s193, 7
        %s195 = scalar_select %p194, %s193, 7
        %s196 = smul.addr %s195, 4
        %s197 = scalar_lea.vmem %s0, %s196
        %p198 = pneg %p44
        %p199 = pneg %p41
        %p200 = pneg %p65
        %p201 = pneg %p62
        %p202 = pneg %p86
        %p203 = pneg %p83
        %p204 = pneg %p112
        %p205 = pneg %p109
        %s206 = sand.u32 %s99, 1
        %s207 = scalar_lea.sflag [#allocation4], %s206
        %s208 = sand.u32 %s99, 1
        %s209 = smul.addr %s208, 24
        %s210 = scalar_lea.vmem [#allocation5], %s209
        %p211 = pneg %p138
        %p212 = pneg %p135
        %s213 = sand.u32 %s125, 1
        %s214 = scalar_lea.sflag [#allocation7], %s213
        %s215 = sand.u32 %s125, 1
        %s216 = smul.addr %s215, 2
        %s217 = scalar_lea.vmem [#allocation6], %s216
        %s218 = smul.u32 2, %s23
        %p219 = scmp.lt.s32.totalorder %s218, 7
        %s220 = scalar_select %p219, %s218, 7
        %s221 = smul.addr %s220, 4
        %s222 = scalar_lea.vmem %s0, %s221
        %s223 = smul.u32 2, %s23
        %s224 = smul.u32 2, %s23
        %v226 = vld [vmem:[%s222] sm:$0xf]
        %v227 = vld [vmem:[%s222 + $0x4] sm:$0xf]
        %v228 = vld [vmem:[#allocation2] sm:$0xf]
        %v229 = vld [vmem:[#allocation2 + $0x4] sm:$0xf]
        %v230 = vld [vmem:[#allocation2 + $0x8] sm:$0xf]
        %v231 = vld [vmem:[#allocation2 + $0xc] sm:$0xf]
        %v232 = vld [vmem:[%s2] sm:$0x1]
        %v234 = vlaneseq
        %v235 = vshrl.u32 %v234, 7
        %v236 = vsub.s32 0, %v235
        %v237 = vrot.slane %v232, %v236
        %v241 = vunpack.c.l.b16 %v226
        %v242 = vunpack.c.l.b16 %v227
        %v243 = vpack.c.b16 %v242, %v241
        %v248 = vunpack.c.l.b16 %v228
        %v249 = vunpack.c.l.b16 %v229
        %v250 = vunpack.c.l.b16 %v230
        %v251 = vunpack.c.l.b16 %v231
        %v252 = vpack.c.b16 %v249, %v248
        %v253 = vpack.c.b16 %v251, %v250
        %vm256 = vcmask 261120
        %v258 = vsel %vm256, %v243, 0
        %260 = vmatprep.subr.bf16.mxu0 0
        %261 = vmatpush1.bf16.msra.mxu0 %v252
        %262 = vmatprep.subr.bf16.mxu0 0
        %263 = vmatpush1.bf16.msra.mxu0 %v253
        %264 = vmatprep.subr.bf16.mxu0 0
        %265 = vmatpush1.bf16.msra.mxu0 0
        %266 = vmatprep.subr.bf16.mxu0 0
        %267 = vmatpush1.bf16.msra.mxu0 0
        %268 = vmatprep.subr.bf16.mxu0 0
        %269 = vmatpush1.bf16.msra.mxu0 0
        %270 = vmatprep.subr.bf16.mxu0 0
        %271 = vmatpush1.bf16.msra.mxu0 0
        %272 = vmatprep.subr.bf16.mxu0 0
        %273 = vmatpush1.bf16.msra.mxu0 0
        %274 = vmatprep.subr.bf16.mxu0 0
        %275 = vmatpush1.bf16.msra.mxu0 0
        %276 = vmatprep.subr.bf16.mxu0 0
        %277 = vmatpush1.bf16.msra.mxu0 0
        %278 = vmatprep.subr.bf16.mxu0 0
        %279 = vmatpush1.bf16.msra.mxu0 0
        %280 = vmatprep.subr.bf16.mxu0 0
        %281 = vmatpush1.bf16.msra.mxu0 0
        %282 = vmatprep.subr.bf16.mxu0 0
        %283 = vmatpush1.bf16.msra.mxu0 0
        %284 = vmatprep.subr.bf16.mxu0 0
        %285 = vmatpush1.bf16.msra.mxu0 0
        %286 = vmatprep.subr.bf16.mxu0 0
        %287 = vmatpush1.bf16.msra.mxu0 0
        %288 = vmatprep.subr.bf16.mxu0 0
        %289 = vmatpush1.bf16.msra.mxu0 0
        %290 = vmatprep.subr.bf16.mxu0 0
        %291 = vmatpush1.bf16.msra.mxu0 0
        %292 = vmatprep.mubr.bf16.mxu0 0
        %293 = vmatmul.mubr.bf16.gmra.mrb[0].mxu0 %v258
        %v294 = vpop.f32.mrb[0].mxu0
        %v295 = vadd.f32 %v237, %v294
        %v296 = vpop.f32.mrb[0].mxu0
        %v297 = vpop.f32.mrb[0].mxu0
        %v298 = vadd.f32 %v237, %v297
        %v299 = vpop.f32.mrb[0].mxu0
        %300 = vdwg.mxu0
        %v301 = vsub.f32 0.0, %v295
        %v302 = vsub.f32 0.0, %v298
        %v303 = vmul.f32 %v301, 1.442695
        %v304 = vpow.pop %v303
        %v305 = vmul.f32 %v302, 1.442695
        %v306 = vpow.pop %v305
        %v307 = vadd.f32 %v304, 1.0
        %v308 = vadd.f32 %v306, 1.0
        %v309 = vrcp.pop %v307
        %v310 = vrcp.pop %v308
        %v311 = vmul.f32 %v295, %v309
        %v312 = vmul.f32 %v298, %v310
        %v313 = vpack.c.bf16 %v312, %v311
        %s314 = scalar_lea.vmem [#allocation2], 64
        %v315 = vld [vmem:[%s314] sm:$0xf]
        %v316 = vld [vmem:[%s314 + $0x4] sm:$0xf]
        %v317 = vld [vmem:[%s314 + $0x8] sm:$0xf]
        %v318 = vld [vmem:[%s314 + $0xc] sm:$0xf]
        %v319 = vld [vmem:[%s314 + $0x10] sm:$0xf]
        %v320 = vld [vmem:[%s314 + $0x14] sm:$0xf]
        %v321 = vld [vmem:[%s314 + $0x18] sm:$0xf]
        %v322 = vld [vmem:[%s314 + $0x1c] sm:$0xf]
        %v323 = vld [vmem:[%s314 + $0x20] sm:$0xf]
        %v324 = vld [vmem:[%s314 + $0x24] sm:$0xf]
        %v325 = vld [vmem:[%s314 + $0x28] sm:$0xf]
        %v326 = vld [vmem:[%s314 + $0x2c] sm:$0xf]
        %v327 = vld [vmem:[%s314 + $0x30] sm:$0xf]
        %v328 = vld [vmem:[%s314 + $0x34] sm:$0xf]
        %v329 = vld [vmem:[%s314 + $0x38] sm:$0xf]
        %v330 = vld [vmem:[%s314 + $0x3c] sm:$0xf]
        %s331 = scalar_lea.vmem %s2, 1
        %v332 = vld [vmem:[%s331] sm:$0x1]
        %v334 = vlaneseq
        %v335 = vshrl.u32 %v334, 7
        %v336 = vsub.s32 0, %v335
        %v337 = vrot.slane %v332, %v336
        %v355 = vunpack.c.l.b16 %v315
        %v356 = vunpack.c.l.b16 %v316
        %v357 = vunpack.c.l.b16 %v317
        %v358 = vunpack.c.l.b16 %v318
        %v359 = vunpack.c.l.b16 %v319
        %v360 = vunpack.c.l.b16 %v320
        %v361 = vunpack.c.l.b16 %v321
        %v362 = vunpack.c.l.b16 %v322
        %v363 = vunpack.c.l.b16 %v323
        %v364 = vunpack.c.l.b16 %v324
        %v365 = vunpack.c.l.b16 %v325
        %v366 = vunpack.c.l.b16 %v326
        %v367 = vunpack.c.l.b16 %v327
        %v368 = vunpack.c.l.b16 %v328
        %v369 = vunpack.c.l.b16 %v329
        %v370 = vunpack.c.l.b16 %v330
        %v371 = vpack.c.b16 %v356, %v355
        %v372 = vpack.c.b16 %v358, %v357
        %v373 = vpack.c.b16 %v360, %v359
        %v374 = vpack.c.b16 %v362, %v361
        %v375 = vpack.c.b16 %v364, %v363
        %v376 = vpack.c.b16 %v366, %v365
        %v377 = vpack.c.b16 %v368, %v367
        %v378 = vpack.c.b16 %v370, %v369
        %387 = vmatprep.subr.bf16.mxu0 0
        %388 = vmatpush1.bf16.msra.mxu0 %v371
        %389 = vmatprep.subr.bf16.mxu0 0
        %390 = vmatpush1.bf16.msra.mxu0 %v372
        %391 = vmatprep.subr.bf16.mxu0 0
        %392 = vmatpush1.bf16.msra.mxu0 %v373
        %393 = vmatprep.subr.bf16.mxu0 0
        %394 = vmatpush1.bf16.msra.mxu0 %v374
        %395 = vmatprep.subr.bf16.mxu0 0
        %396 = vmatpush1.bf16.msra.mxu0 %v375
        %397 = vmatprep.subr.bf16.mxu0 0
        %398 = vmatpush1.bf16.msra.mxu0 %v376
        %399 = vmatprep.subr.bf16.mxu0 0
        %400 = vmatpush1.bf16.msra.mxu0 %v377
        %401 = vmatprep.subr.bf16.mxu0 0
        %402 = vmatpush1.bf16.msra.mxu0 %v378
        %403 = vmatprep.subr.bf16.mxu0 0
        %404 = vmatpush1.bf16.msra.mxu0 0
        %405 = vmatprep.subr.bf16.mxu0 0
        %406 = vmatpush1.bf16.msra.mxu0 0
        %407 = vmatprep.subr.bf16.mxu0 0
        %408 = vmatpush1.bf16.msra.mxu0 0
        %409 = vmatprep.subr.bf16.mxu0 0
        %410 = vmatpush1.bf16.msra.mxu0 0
        %411 = vmatprep.subr.bf16.mxu0 0
        %412 = vmatpush1.bf16.msra.mxu0 0
        %413 = vmatprep.subr.bf16.mxu0 0
        %414 = vmatpush1.bf16.msra.mxu0 0
        %415 = vmatprep.subr.bf16.mxu0 0
        %416 = vmatpush1.bf16.msra.mxu0 0
        %417 = vmatprep.subr.bf16.mxu0 0
        %418 = vmatpush1.bf16.msra.mxu0 0
        %419 = vmatprep.mubr.bf16.mxu0 0
        %420 = vmatmul.mubr.bf16.gmra.mrb[0].mxu0 %v313
        %v421 = vpop.f32.mrb[0].mxu0
        %v422 = vadd.f32 %v337, %v421
        %v423 = vpop.f32.mrb[0].mxu0
        %v424 = vpop.f32.mrb[0].mxu0
        %v425 = vadd.f32 %v337, %v424
        %v426 = vpop.f32.mrb[0].mxu0
        %427 = vdwg.mxu0
        %v428 = vsub.f32 0.0, %v422
        %v429 = vsub.f32 0.0, %v425
        %v430 = vmul.f32 %v428, 1.442695
        %v431 = vpow.pop %v430
        %v432 = vmul.f32 %v429, 1.442695
        %v433 = vpow.pop %v432
        %v434 = vadd.f32 %v431, 1.0
        %v435 = vadd.f32 %v433, 1.0
        %v436 = vrcp.pop %v434
        %v437 = vrcp.pop %v435
        %v438 = vmul.f32 %v422, %v436
        %v439 = vmul.f32 %v425, %v437
        %v440 = vpack.c.bf16 %v439, %v438
        %s441 = scalar_lea.vmem [#allocation2], 128
        %v442 = vld [vmem:[%s441] sm:$0xf]
        %v443 = vld [vmem:[%s441 + $0x4] sm:$0xf]
        %v444 = vld [vmem:[%s441 + $0x8] sm:$0xf]
        %v445 = vld [vmem:[%s441 + $0xc] sm:$0xf]
        %v446 = vld [vmem:[%s441 + $0x10] sm:$0xf]
        %v447 = vld [vmem:[%s441 + $0x14] sm:$0xf]
        %v448 = vld [vmem:[%s441 + $0x18] sm:$0xf]
        %v449 = vld [vmem:[%s441 + $0x1c] sm:$0xf]
        %v450 = vld [vmem:[%s441 + $0x20] sm:$0xf]
        %v451 = vld [vmem:[%s441 + $0x24] sm:$0xf]
        %v452 = vld [vmem:[%s441 + $0x28] sm:$0xf]
        %v453 = vld [vmem:[%s441 + $0x2c] sm:$0xf]
        %v454 = vld [vmem:[%s441 + $0x30] sm:$0xf]
        %v455 = vld [vmem:[%s441 + $0x34] sm:$0xf]
        %v456 = vld [vmem:[%s441 + $0x38] sm:$0xf]
        %v457 = vld [vmem:[%s441 + $0x3c] sm:$0xf]
        %s458 = scalar_lea.vmem %s2, 2
        %v459 = vld [vmem:[%s458] sm:$0x1]
        %v461 = vlaneseq
        %v462 = vshrl.u32 %v461, 7
        %v463 = vsub.s32 0, %v462
        %v464 = vrot.slane %v459, %v463
        %v482 = vunpack.c.l.b16 %v442
        %v483 = vunpack.c.l.b16 %v443
        %v484 = vunpack.c.l.b16 %v444
        %v485 = vunpack.c.l.b16 %v445
        %v486 = vunpack.c.l.b16 %v446
        %v487 = vunpack.c.l.b16 %v447
        %v488 = vunpack.c.l.b16 %v448
        %v489 = vunpack.c.l.b16 %v449
        %v490 = vunpack.c.l.b16 %v450
        %v491 = vunpack.c.l.b16 %v451
        %v492 = vunpack.c.l.b16 %v452
        %v493 = vunpack.c.l.b16 %v453
        %v494 = vunpack.c.l.b16 %v454
        %v495 = vunpack.c.l.b16 %v455
        %v496 = vunpack.c.l.b16 %v456
        %v497 = vunpack.c.l.b16 %v457
        %v498 = vpack.c.b16 %v483, %v482
        %v499 = vpack.c.b16 %v485, %v484
        %v500 = vpack.c.b16 %v487, %v486
        %v501 = vpack.c.b16 %v489, %v488
        %v502 = vpack.c.b16 %v491, %v490
        %v503 = vpack.c.b16 %v493, %v492
        %v504 = vpack.c.b16 %v495, %v494
        %v505 = vpack.c.b16 %v497, %v496
        %514 = vmatprep.subr.bf16.mxu0 0
        %515 = vmatpush1.bf16.msra.mxu0 %v498
        %516 = vmatprep.subr.bf16.mxu0 0
        %517 = vmatpush1.bf16.msra.mxu0 %v499
        %518 = vmatprep.subr.bf16.mxu0 0
        %519 = vmatpush1.bf16.msra.mxu0 %v500
        %520 = vmatprep.subr.bf16.mxu0 0
        %521 = vmatpush1.bf16.msra.mxu0 %v501
        %522 = vmatprep.subr.bf16.mxu0 0
        %523 = vmatpush1.bf16.msra.mxu0 %v502
        %524 = vmatprep.subr.bf16.mxu0 0
        %525 = vmatpush1.bf16.msra.mxu0 %v503
        %526 = vmatprep.subr.bf16.mxu0 0
        %527 = vmatpush1.bf16.msra.mxu0 %v504
        %528 = vmatprep.subr.bf16.mxu0 0
        %529 = vmatpush1.bf16.msra.mxu0 %v505
        %530 = vmatprep.subr.bf16.mxu0 0
        %531 = vmatpush1.bf16.msra.mxu0 0
        %532 = vmatprep.subr.bf16.mxu0 0
        %533 = vmatpush1.bf16.msra.mxu0 0
        %534 = vmatprep.subr.bf16.mxu0 0
        %535 = vmatpush1.bf16.msra.mxu0 0
        %536 = vmatprep.subr.bf16.mxu0 0
        %537 = vmatpush1.bf16.msra.mxu0 0
        %538 = vmatprep.subr.bf16.mxu0 0
        %539 = vmatpush1.bf16.msra.mxu0 0
        %540 = vmatprep.subr.bf16.mxu0 0
        %541 = vmatpush1.bf16.msra.mxu0 0
        %542 = vmatprep.subr.bf16.mxu0 0
        %543 = vmatpush1.bf16.msra.mxu0 0
        %544 = vmatprep.subr.bf16.mxu0 0
        %545 = vmatpush1.bf16.msra.mxu0 0
        %546 = vmatprep.mubr.bf16.mxu0 0
        %547 = vmatmul.mubr.bf16.gmra.mrb[0].mxu0 %v440
        %v548 = vpop.f32.mrb[0].mxu0
        %v549 = vadd.f32 %v464, %v548
        %v550 = vpop.f32.mrb[0].mxu0
        %v551 = vpop.f32.mrb[0].mxu0
        %v552 = vadd.f32 %v464, %v551
        %v553 = vpop.f32.mrb[0].mxu0
        %554 = vdwg.mxu0
        %v555 = vsub.f32 0.0, %v549
        %v556 = vsub.f32 0.0, %v552
        %v557 = vmul.f32 %v555, 1.442695
        %v558 = vpow.pop %v557
        %v559 = vmul.f32 %v556, 1.442695
        %v560 = vpow.pop %v559
        %v561 = vadd.f32 %v558, 1.0
        %v562 = vadd.f32 %v560, 1.0
        %v563 = vrcp.pop %v561
        %v564 = vrcp.pop %v562
        %v565 = vmul.f32 %v549, %v563
        %v566 = vmul.f32 %v552, %v564
        %v567 = vpack.c.bf16 %v566, %v565
        %v568 = vunpack.c.l.bf16 %v567
        %v569 = vunpack.c.h.bf16 %v567
        %s570 = scalar_lea.vmem [#allocation2], 192
        %v571 = vld [vmem:[%s570] sm:$0xf]
        %v572 = vld [vmem:[%s570 + $0x4] sm:$0xf]
        %v573 = vld [vmem:[%s570 + $0x8] sm:$0xf]
        %v574 = vld [vmem:[%s570 + $0xc] sm:$0xf]
        %v575 = vld [vmem:[%s570 + $0x10] sm:$0xf]
        %v576 = vld [vmem:[%s570 + $0x14] sm:$0xf]
        %v577 = vld [vmem:[%s570 + $0x18] sm:$0xf]
        %v578 = vld [vmem:[%s570 + $0x1c] sm:$0xf]
        %v579 = vld [vmem:[%s570 + $0x20] sm:$0xf]
        %v580 = vld [vmem:[%s570 + $0x24] sm:$0xf]
        %v581 = vld [vmem:[%s570 + $0x28] sm:$0xf]
        %v582 = vld [vmem:[%s570 + $0x2c] sm:$0xf]
        %v583 = vld [vmem:[%s570 + $0x30] sm:$0xf]
        %v584 = vld [vmem:[%s570 + $0x34] sm:$0xf]
        %v585 = vld [vmem:[%s570 + $0x38] sm:$0xf]
        %v586 = vld [vmem:[%s570 + $0x3c] sm:$0xf]
        %s587 = scalar_lea.vmem %s2, 3
        %v588 = vld [vmem:[%s587] sm:$0x1]
        %v590 = vlaneseq
        %v591 = vshrl.u32 %v590, 7
        %v592 = vsub.s32 0, %v591
        %v593 = vrot.slane %v588, %v592
        %v611 = vunpack.c.l.b16 %v571
        %v612 = vunpack.c.l.b16 %v572
        %v613 = vunpack.c.l.b16 %v573
        %v614 = vunpack.c.l.b16 %v574
        %v615 = vunpack.c.l.b16 %v575
        %v616 = vunpack.c.l.b16 %v576
        %v617 = vunpack.c.l.b16 %v577
        %v618 = vunpack.c.l.b16 %v578
        %v619 = vunpack.c.l.b16 %v579
        %v620 = vunpack.c.l.b16 %v580
        %v621 = vunpack.c.l.b16 %v581
        %v622 = vunpack.c.l.b16 %v582
        %v623 = vunpack.c.l.b16 %v583
        %v624 = vunpack.c.l.b16 %v584
        %v625 = vunpack.c.l.b16 %v585
        %v626 = vunpack.c.l.b16 %v586
        %v627 = vpack.c.b16 %v612, %v611
        %v628 = vpack.c.b16 %v614, %v613
        %v629 = vpack.c.b16 %v616, %v615
        %v630 = vpack.c.b16 %v618, %v617
        %v631 = vpack.c.b16 %v620, %v619
        %v632 = vpack.c.b16 %v622, %v621
        %v633 = vpack.c.b16 %v624, %v623
        %v634 = vpack.c.b16 %v626, %v625
        %643 = vmatprep.subr.bf16.mxu0 0
        %644 = vmatpush1.bf16.msra.mxu0 %v627
        %645 = vmatprep.subr.bf16.mxu0 0
        %646 = vmatpush1.bf16.msra.mxu0 %v628
        %647 = vmatprep.subr.bf16.mxu0 0
        %648 = vmatpush1.bf16.msra.mxu0 %v629
        %649 = vmatprep.subr.bf16.mxu0 0
        %650 = vmatpush1.bf16.msra.mxu0 %v630
        %651 = vmatprep.subr.bf16.mxu0 0
        %652 = vmatpush1.bf16.msra.mxu0 %v631
        %653 = vmatprep.subr.bf16.mxu0 0
        %654 = vmatpush1.bf16.msra.mxu0 %v632
        %655 = vmatprep.subr.bf16.mxu0 0
        %656 = vmatpush1.bf16.msra.mxu0 %v633
        %657 = vmatprep.subr.bf16.mxu0 0
        %658 = vmatpush1.bf16.msra.mxu0 %v634
        %659 = vmatprep.subr.bf16.mxu0 0
        %660 = vmatpush1.bf16.msra.mxu0 0
        %661 = vmatprep.subr.bf16.mxu0 0
        %662 = vmatpush1.bf16.msra.mxu0 0
        %663 = vmatprep.subr.bf16.mxu0 0
        %664 = vmatpush1.bf16.msra.mxu0 0
        %665 = vmatprep.subr.bf16.mxu0 0
        %666 = vmatpush1.bf16.msra.mxu0 0
        %667 = vmatprep.subr.bf16.mxu0 0
        %668 = vmatpush1.bf16.msra.mxu0 0
        %669 = vmatprep.subr.bf16.mxu0 0
        %670 = vmatpush1.bf16.msra.mxu0 0
        %671 = vmatprep.subr.bf16.mxu0 0
        %672 = vmatpush1.bf16.msra.mxu0 0
        %673 = vmatprep.subr.bf16.mxu0 0
        %674 = vmatpush1.bf16.msra.mxu0 0
        %675 = vmatprep.mubr.bf16.mxu0 0
        %676 = vmatmul.mubr.bf16.gmra.mrb[0].mxu0 %v567
        %v677 = vpop.f32.mrb[0].mxu0
        %v678 = vadd.f32 %v593, %v677
        %v679 = vpop.f32.mrb[0].mxu0
        %v680 = vpop.f32.mrb[0].mxu0
        %v681 = vadd.f32 %v593, %v680
        %v682 = vpop.f32.mrb[0].mxu0
        %683 = vdwg.mxu0
        %v684 = vsub.f32 0.0, %v678
        %v685 = vsub.f32 0.0, %v681
        %v686 = vmul.f32 %v684, 1.442695
        %v687 = vpow.pop %v686
        %v688 = vmul.f32 %v685, 1.442695
        %v689 = vpow.pop %v688
        %v690 = vadd.f32 %v687, 1.0
        %v691 = vadd.f32 %v689, 1.0
        %v692 = vrcp.pop %v690
        %v693 = vrcp.pop %v691
        %v694 = vmul.f32 %v678, %v692
        %v695 = vmul.f32 %v681, %v693
        %v696 = vpack.c.bf16 %v695, %v694
        %s697 = scalar_lea.vmem [#allocation2], 256
        %v698 = vld [vmem:[%s697] sm:$0xf]
        %v699 = vld [vmem:[%s697 + $0x4] sm:$0xf]
        %v700 = vld [vmem:[%s697 + $0x8] sm:$0xf]
        %v701 = vld [vmem:[%s697 + $0xc] sm:$0xf]
        %v702 = vld [vmem:[%s697 + $0x10] sm:$0xf]
        %v703 = vld [vmem:[%s697 + $0x14] sm:$0xf]
        %v704 = vld [vmem:[%s697 + $0x18] sm:$0xf]
        %v705 = vld [vmem:[%s697 + $0x1c] sm:$0xf]
        %v706 = vld [vmem:[%s697 + $0x20] sm:$0xf]
        %v707 = vld [vmem:[%s697 + $0x24] sm:$0xf]
        %v708 = vld [vmem:[%s697 + $0x28] sm:$0xf]
        %v709 = vld [vmem:[%s697 + $0x2c] sm:$0xf]
        %v710 = vld [vmem:[%s697 + $0x30] sm:$0xf]
        %v711 = vld [vmem:[%s697 + $0x34] sm:$0xf]
        %v712 = vld [vmem:[%s697 + $0x38] sm:$0xf]
        %v713 = vld [vmem:[%s697 + $0x3c] sm:$0xf]
        %s714 = scalar_lea.vmem %s2, 4
        %v715 = vld [vmem:[%s714] sm:$0x1]
        %v717 = vlaneseq
        %v718 = vshrl.u32 %v717, 7
        %v719 = vsub.s32 0, %v718
        %v720 = vrot.slane %v715, %v719
        %v738 = vunpack.c.l.b16 %v698
        %v739 = vunpack.c.l.b16 %v699
        %v740 = vunpack.c.l.b16 %v700
        %v741 = vunpack.c.l.b16 %v701
        %v742 = vunpack.c.l.b16 %v702
        %v743 = vunpack.c.l.b16 %v703
        %v744 = vunpack.c.l.b16 %v704
        %v745 = vunpack.c.l.b16 %v705
        %v746 = vunpack.c.l.b16 %v706
        %v747 = vunpack.c.l.b16 %v707
        %v748 = vunpack.c.l.b16 %v708
        %v749 = vunpack.c.l.b16 %v709
        %v750 = vunpack.c.l.b16 %v710
        %v751 = vunpack.c.l.b16 %v711
        %v752 = vunpack.c.l.b16 %v712
        %v753 = vunpack.c.l.b16 %v713
        %v754 = vpack.c.b16 %v739, %v738
        %v755 = vpack.c.b16 %v741, %v740
        %v756 = vpack.c.b16 %v743, %v742
        %v757 = vpack.c.b16 %v745, %v744
        %v758 = vpack.c.b16 %v747, %v746
        %v759 = vpack.c.b16 %v749, %v748
        %v760 = vpack.c.b16 %v751, %v750
        %v761 = vpack.c.b16 %v753, %v752
        %770 = vmatprep.subr.bf16.mxu0 0
        %771 = vmatpush1.bf16.msra.mxu0 %v754
        %772 = vmatprep.subr.bf16.mxu0 0
        %773 = vmatpush1.bf16.msra.mxu0 %v755
        %774 = vmatprep.subr.bf16.mxu0 0
        %775 = vmatpush1.bf16.msra.mxu0 %v756
        %776 = vmatprep.subr.bf16.mxu0 0
        %777 = vmatpush1.bf16.msra.mxu0 %v757
        %778 = vmatprep.subr.bf16.mxu0 0
        %779 = vmatpush1.bf16.msra.mxu0 %v758
        %780 = vmatprep.subr.bf16.mxu0 0
        %781 = vmatpush1.bf16.msra.mxu0 %v759
        %782 = vmatprep.subr.bf16.mxu0 0
        %783 = vmatpush1.bf16.msra.mxu0 %v760
        %784 = vmatprep.subr.bf16.mxu0 0
        %785 = vmatpush1.bf16.msra.mxu0 %v761
        %786 = vmatprep.subr.bf16.mxu0 0
        %787 = vmatpush1.bf16.msra.mxu0 0
        %788 = vmatprep.subr.bf16.mxu0 0
        %789 = vmatpush1.bf16.msra.mxu0 0
        %790 = vmatprep.subr.bf16.mxu0 0
        %791 = vmatpush1.bf16.msra.mxu0 0
        %792 = vmatprep.subr.bf16.mxu0 0
        %793 = vmatpush1.bf16.msra.mxu0 0
        %794 = vmatprep.subr.bf16.mxu0 0
        %795 = vmatpush1.bf16.msra.mxu0 0
        %796 = vmatprep.subr.bf16.mxu0 0
        %797 = vmatpush1.bf16.msra.mxu0 0
        %798 = vmatprep.subr.bf16.mxu0 0
        %799 = vmatpush1.bf16.msra.mxu0 0
        %800 = vmatprep.subr.bf16.mxu0 0
        %801 = vmatpush1.bf16.msra.mxu0 0
        %802 = vmatprep.mubr.bf16.mxu0 0
        %803 = vmatmul.mubr.bf16.gmra.mrb[0].mxu0 %v696
        %v804 = vpop.f32.mrb[0].mxu0
        %v805 = vadd.f32 %v720, %v804
        %v806 = vpop.f32.mrb[0].mxu0
        %v807 = vpop.f32.mrb[0].mxu0
        %v808 = vadd.f32 %v720, %v807
        %v809 = vpop.f32.mrb[0].mxu0
        %810 = vdwg.mxu0
        %v811 = vsub.f32 0.0, %v805
        %v812 = vsub.f32 0.0, %v808
        %v813 = vmul.f32 %v811, 1.442695
        %v814 = vpow.pop %v813
        %v815 = vmul.f32 %v812, 1.442695
        %v816 = vpow.pop %v815
        %v817 = vadd.f32 %v814, 1.0
        %v818 = vadd.f32 %v816, 1.0
        %v819 = vrcp.pop %v817
        %v820 = vrcp.pop %v818
        %v821 = vmul.f32 %v805, %v819
        %v822 = vmul.f32 %v808, %v820
        %v823 = vpack.c.bf16 %v822, %v821
        %s824 = scalar_lea.vmem [#allocation2], 320
        %v825 = vld [vmem:[%s824] sm:$0xf]
        %v826 = vld [vmem:[%s824 + $0x4] sm:$0xf]
        %v827 = vld [vmem:[%s824 + $0x8] sm:$0xf]
        %v828 = vld [vmem:[%s824 + $0xc] sm:$0xf]
        %v829 = vld [vmem:[%s824 + $0x10] sm:$0xf]
        %v830 = vld [vmem:[%s824 + $0x14] sm:$0xf]
        %v831 = vld [vmem:[%s824 + $0x18] sm:$0xf]
        %v832 = vld [vmem:[%s824 + $0x1c] sm:$0xf]
        %v833 = vld [vmem:[%s824 + $0x20] sm:$0xf]
        %v834 = vld [vmem:[%s824 + $0x24] sm:$0xf]
        %v835 = vld [vmem:[%s824 + $0x28] sm:$0xf]
        %v836 = vld [vmem:[%s824 + $0x2c] sm:$0xf]
        %v837 = vld [vmem:[%s824 + $0x30] sm:$0xf]
        %v838 = vld [vmem:[%s824 + $0x34] sm:$0xf]
        %v839 = vld [vmem:[%s824 + $0x38] sm:$0xf]
        %v840 = vld [vmem:[%s824 + $0x3c] sm:$0xf]
        %s841 = scalar_lea.vmem %s2, 5
        %v842 = vld [vmem:[%s841] sm:$0x1]
        %v844 = vlaneseq
        %v845 = vshrl.u32 %v844, 7
        %v846 = vsub.s32 0, %v845
        %v847 = vrot.slane %v842, %v846
        %v865 = vunpack.c.l.b16 %v825
        %v866 = vunpack.c.l.b16 %v826
        %v867 = vunpack.c.l.b16 %v827
        %v868 = vunpack.c.l.b16 %v828
        %v869 = vunpack.c.l.b16 %v829
        %v870 = vunpack.c.l.b16 %v830
        %v871 = vunpack.c.l.b16 %v831
        %v872 = vunpack.c.l.b16 %v832
        %v873 = vunpack.c.l.b16 %v833
        %v874 = vunpack.c.l.b16 %v834
        %v875 = vunpack.c.l.b16 %v835
        %v876 = vunpack.c.l.b16 %v836
        %v877 = vunpack.c.l.b16 %v837
        %v878 = vunpack.c.l.b16 %v838
        %v879 = vunpack.c.l.b16 %v839
        %v880 = vunpack.c.l.b16 %v840
        %v881 = vpack.c.b16 %v866, %v865
        %v882 = vpack.c.b16 %v868, %v867
        %v883 = vpack.c.b16 %v870, %v869
        %v884 = vpack.c.b16 %v872, %v871
        %v885 = vpack.c.b16 %v874, %v873
        %v886 = vpack.c.b16 %v876, %v875
        %v887 = vpack.c.b16 %v878, %v877
        %v888 = vpack.c.b16 %v880, %v879
        %897 = vmatprep.subr.bf16.mxu0 0
        %898 = vmatpush1.bf16.msra.mxu0 %v881
        %899 = vmatprep.subr.bf16.mxu0 0
        %900 = vmatpush1.bf16.msra.mxu0 %v882
        %901 = vmatprep.subr.bf16.mxu0 0
        %902 = vmatpush1.bf16.msra.mxu0 %v883
        %903 = vmatprep.subr.bf16.mxu0 0
        %904 = vmatpush1.bf16.msra.mxu0 %v884
        %905 = vmatprep.subr.bf16.mxu0 0
        %906 = vmatpush1.bf16.msra.mxu0 %v885
        %907 = vmatprep.subr.bf16.mxu0 0
        %908 = vmatpush1.bf16.msra.mxu0 %v886
        %909 = vmatprep.subr.bf16.mxu0 0
        %910 = vmatpush1.bf16.msra.mxu0 %v887
        %911 = vmatprep.subr.bf16.mxu0 0
        %912 = vmatpush1.bf16.msra.mxu0 %v888
        %913 = vmatprep.subr.bf16.mxu0 0
        %914 = vmatpush1.bf16.msra.mxu0 0
        %915 = vmatprep.subr.bf16.mxu0 0
        %916 = vmatpush1.bf16.msra.mxu0 0
        %917 = vmatprep.subr.bf16.mxu0 0
        %918 = vmatpush1.bf16.msra.mxu0 0
        %919 = vmatprep.subr.bf16.mxu0 0
        %920 = vmatpush1.bf16.msra.mxu0 0
        %921 = vmatprep.subr.bf16.mxu0 0
        %922 = vmatpush1.bf16.msra.mxu0 0
        %923 = vmatprep.subr.bf16.mxu0 0
        %924 = vmatpush1.bf16.msra.mxu0 0
        %925 = vmatprep.subr.bf16.mxu0 0
        %926 = vmatpush1.bf16.msra.mxu0 0
        %927 = vmatprep.subr.bf16.mxu0 0
        %928 = vmatpush1.bf16.msra.mxu0 0
        %929 = vmatprep.mubr.bf16.mxu0 0
        %930 = vmatmul.mubr.bf16.gmra.mrb[0].mxu0 %v823
        %v931 = vpop.f32.mrb[0].mxu0
        %v932 = vadd.f32 %v847, %v931
        %v933 = vpop.f32.mrb[0].mxu0
        %v934 = vpop.f32.mrb[0].mxu0
        %v935 = vadd.f32 %v847, %v934
        %v936 = vpop.f32.mrb[0].mxu0
        %937 = vdwg.mxu0
        %v938 = vsub.f32 0.0, %v932
        %v939 = vsub.f32 0.0, %v935
        %v940 = vmul.f32 %v938, 1.442695
        %v941 = vpow.pop %v940
        %v942 = vmul.f32 %v939, 1.442695
        %v943 = vpow.pop %v942
        %v944 = vadd.f32 %v941, 1.0
        %v945 = vadd.f32 %v943, 1.0
        %v946 = vrcp.pop %v944
        %v947 = vrcp.pop %v945
        %v948 = vmul.f32 %v932, %v946
        %v949 = vmul.f32 %v935, %v947
        %v950 = vpack.c.bf16 %v949, %v948
        %v951 = vunpack.c.l.bf16 %v950
        %v952 = vunpack.c.h.bf16 %v950
        %v953 = vadd.f32 %v568, %v951
        %v954 = vadd.f32 %v569, %v952
        %v955 = vpack.c.bf16 %v954, %v953
        %v957 = vunpack.c.l.b16 %v955
        %v958 = vunpack.c.h.b16 %v955
        %v959 = vpack.c.b16 %v957, %v957
        %v960 = vpack.c.b16 %v958, %v958
        %963 = vst [vmem:[%s210] sm:$0xf] %v959
        %964 = vst [vmem:[%s210 + $0x4] sm:$0xf] %v960
        %s965 = scalar_lea.vmem [#allocation2], 384
        %v966 = vld [vmem:[%s965] sm:$0xf]
        %v967 = vld [vmem:[%s965 + $0x4] sm:$0xf]
        %v968 = vld [vmem:[%s965 + $0x8] sm:$0xf]
        %v969 = vld [vmem:[%s965 + $0xc] sm:$0xf]
        %v970 = vld [vmem:[%s965 + $0x10] sm:$0xf]
        %v971 = vld [vmem:[%s965 + $0x14] sm:$0xf]
        %v972 = vld [vmem:[%s965 + $0x18] sm:$0xf]
        %v973 = vld [vmem:[%s965 + $0x1c] sm:$0xf]
        %v974 = vld [vmem:[%s965 + $0x20] sm:$0xf]
        %v975 = vld [vmem:[%s965 + $0x24] sm:$0xf]
        %v976 = vld [vmem:[%s965 + $0x28] sm:$0xf]
        %v977 = vld [vmem:[%s965 + $0x2c] sm:$0xf]
        %v978 = vld [vmem:[%s965 + $0x30] sm:$0xf]
        %v979 = vld [vmem:[%s965 + $0x34] sm:$0xf]
        %v980 = vld [vmem:[%s965 + $0x38] sm:$0xf]
        %v981 = vld [vmem:[%s965 + $0x3c] sm:$0xf]
        %s982 = scalar_lea.vmem %s2, 6
        %v983 = vld [vmem:[%s982] sm:$0x1]
        %v985 = vlaneseq
        %v986 = vshrl.u32 %v985, 7
        %v987 = vsub.s32 0, %v986
        %v988 = vrot.slane %v983, %v987
        %v1006 = vunpack.c.l.b16 %v966
        %v1007 = vunpack.c.l.b16 %v967
        %v1008 = vunpack.c.l.b16 %v968
        %v1009 = vunpack.c.l.b16 %v969
        %v1010 = vunpack.c.l.b16 %v970
        %v1011 = vunpack.c.l.b16 %v971
        %v1012 = vunpack.c.l.b16 %v972
        %v1013 = vunpack.c.l.b16 %v973
        %v1014 = vunpack.c.l.b16 %v974
        %v1015 = vunpack.c.l.b16 %v975
        %v1016 = vunpack.c.l.b16 %v976
        %v1017 = vunpack.c.l.b16 %v977
        %v1018 = vunpack.c.l.b16 %v978
        %v1019 = vunpack.c.l.b16 %v979
        %v1020 = vunpack.c.l.b16 %v980
        %v1021 = vunpack.c.l.b16 %v981
        %v1022 = vpack.c.b16 %v1007, %v1006
        %v1023 = vpack.c.b16 %v1009, %v1008
        %v1024 = vpack.c.b16 %v1011, %v1010
        %v1025 = vpack.c.b16 %v1013, %v1012
        %v1026 = vpack.c.b16 %v1015, %v1014
        %v1027 = vpack.c.b16 %v1017, %v1016
        %v1028 = vpack.c.b16 %v1019, %v1018
        %v1029 = vpack.c.b16 %v1021, %v1020
        %1038 = vmatprep.subr.bf16.mxu0 0
        %1039 = vmatpush1.bf16.msra.mxu0 %v1022
        %1040 = vmatprep.subr.bf16.mxu0 0
        %1041 = vmatpush1.bf16.msra.mxu0 %v1023
        %1042 = vmatprep.subr.bf16.mxu0 0
        %1043 = vmatpush1.bf16.msra.mxu0 %v1024
        %1044 = vmatprep.subr.bf16.mxu0 0
        %1045 = vmatpush1.bf16.msra.mxu0 %v1025
        %1046 = vmatprep.subr.bf16.mxu0 0
        %1047 = vmatpush1.bf16.msra.mxu0 %v1026
        %1048 = vmatprep.subr.bf16.mxu0 0
        %1049 = vmatpush1.bf16.msra.mxu0 %v1027
        %1050 = vmatprep.subr.bf16.mxu0 0
        %1051 = vmatpush1.bf16.msra.mxu0 %v1028
        %1052 = vmatprep.subr.bf16.mxu0 0
        %1053 = vmatpush1.bf16.msra.mxu0 %v1029
        %1054 = vmatprep.subr.bf16.mxu0 0
        %1055 = vmatpush1.bf16.msra.mxu0 0
        %1056 = vmatprep.subr.bf16.mxu0 0
        %1057 = vmatpush1.bf16.msra.mxu0 0
        %1058 = vmatprep.subr.bf16.mxu0 0
        %1059 = vmatpush1.bf16.msra.mxu0 0
        %1060 = vmatprep.subr.bf16.mxu0 0
        %1061 = vmatpush1.bf16.msra.mxu0 0
        %1062 = vmatprep.subr.bf16.mxu0 0
        %1063 = vmatpush1.bf16.msra.mxu0 0
        %1064 = vmatprep.subr.bf16.mxu0 0
        %1065 = vmatpush1.bf16.msra.mxu0 0
        %1066 = vmatprep.subr.bf16.mxu0 0
        %1067 = vmatpush1.bf16.msra.mxu0 0
        %1068 = vmatprep.subr.bf16.mxu0 0
        %1069 = vmatpush1.bf16.msra.mxu0 0
        %1070 = vmatprep.mubr.bf16.mxu0 0
        %1071 = vmatmul.mubr.bf16.gmra.mrb[0].mxu0 %v955
        %v1072 = vpop.f32.mrb[0].mxu0
        %v1073 = vadd.f32 %v988, %v1072
        %v1074 = vpop.f32.mrb[0].mxu0
        %v1075 = vpop.f32.mrb[0].mxu0
        %v1076 = vadd.f32 %v988, %v1075
        %v1077 = vpop.f32.mrb[0].mxu0
        %1078 = vdwg.mxu0
        %v1079 = vsub.f32 0.0, %v1073
        %v1080 = vsub.f32 0.0, %v1076
        %v1081 = vmul.f32 %v1079, 1.442695
        %v1082 = vpow.pop %v1081
        %v1083 = vmul.f32 %v1080, 1.442695
        %v1084 = vpow.pop %v1083
        %v1085 = vadd.f32 %v1082, 1.0
        %v1086 = vadd.f32 %v1084, 1.0
        %v1087 = vrcp.pop %v1085
        %v1088 = vrcp.pop %v1086
        %v1089 = vmul.f32 %v1073, %v1087
        %v1090 = vmul.f32 %v1076, %v1088
        %v1091 = vpack.c.bf16 %v1090, %v1089
        %s1092 = scalar_lea.vmem [#allocation2], 448
        %v1093 = vld [vmem:[%s1092] sm:$0xf]
        %v1094 = vld [vmem:[%s1092 + $0x4] sm:$0xf]
        %v1095 = vld [vmem:[%s1092 + $0x8] sm:$0xf]
        %v1096 = vld [vmem:[%s1092 + $0xc] sm:$0xf]
        %v1097 = vld [vmem:[%s1092 + $0x10] sm:$0xf]
        %v1098 = vld [vmem:[%s1092 + $0x14] sm:$0xf]
        %v1099 = vld [vmem:[%s1092 + $0x18] sm:$0xf]
        %v1100 = vld [vmem:[%s1092 + $0x1c] sm:$0xf]
        %v1101 = vld [vmem:[%s1092 + $0x20] sm:$0xf]
        %v1102 = vld [vmem:[%s1092 + $0x24] sm:$0xf]
        %v1103 = vld [vmem:[%s1092 + $0x28] sm:$0xf]
        %v1104 = vld [vmem:[%s1092 + $0x2c] sm:$0xf]
        %v1105 = vld [vmem:[%s1092 + $0x30] sm:$0xf]
        %v1106 = vld [vmem:[%s1092 + $0x34] sm:$0xf]
        %v1107 = vld [vmem:[%s1092 + $0x38] sm:$0xf]
        %v1108 = vld [vmem:[%s1092 + $0x3c] sm:$0xf]
        %s1109 = scalar_lea.vmem %s2, 7
        %v1110 = vld [vmem:[%s1109] sm:$0x1]
        %v1112 = vlaneseq
        %v1113 = vshrl.u32 %v1112, 7
        %v1114 = vsub.s32 0, %v1113
        %v1115 = vrot.slane %v1110, %v1114
        %v1133 = vunpack.c.l.b16 %v1093
        %v1134 = vunpack.c.l.b16 %v1094
        %v1135 = vunpack.c.l.b16 %v1095
        %v1136 = vunpack.c.l.b16 %v1096
        %v1137 = vunpack.c.l.b16 %v1097
        %v1138 = vunpack.c.l.b16 %v1098
        %v1139 = vunpack.c.l.b16 %v1099
        %v1140 = vunpack.c.l.b16 %v1100
        %v1141 = vunpack.c.l.b16 %v1101
        %v1142 = vunpack.c.l.b16 %v1102
        %v1143 = vunpack.c.l.b16 %v1103
        %v1144 = vunpack.c.l.b16 %v1104
        %v1145 = vunpack.c.l.b16 %v1105
        %v1146 = vunpack.c.l.b16 %v1106
        %v1147 = vunpack.c.l.b16 %v1107
        %v1148 = vunpack.c.l.b16 %v1108
        %v1149 = vpack.c.b16 %v1134, %v1133
        %v1150 = vpack.c.b16 %v1136, %v1135
        %v1151 = vpack.c.b16 %v1138, %v1137
        %v1152 = vpack.c.b16 %v1140, %v1139
        %v1153 = vpack.c.b16 %v1142, %v1141
        %v1154 = vpack.c.b16 %v1144, %v1143
        %v1155 = vpack.c.b16 %v1146, %v1145
        %v1156 = vpack.c.b16 %v1148, %v1147
        %1165 = vmatprep.subr.bf16.mxu0 0
        %1166 = vmatpush1.bf16.msra.mxu0 %v1149
        %1167 = vmatprep.subr.bf16.mxu0 0
        %1168 = vmatpush1.bf16.msra.mxu0 %v1150
        %1169 = vmatprep.subr.bf16.mxu0 0
        %1170 = vmatpush1.bf16.msra.mxu0 %v1151
        %1171 = vmatprep.subr.bf16.mxu0 0
        %1172 = vmatpush1.bf16.msra.mxu0 %v1152
        %1173 = vmatprep.subr.bf16.mxu0 0
        %1174 = vmatpush1.bf16.msra.mxu0 %v1153
        %1175 = vmatprep.subr.bf16.mxu0 0
        %1176 = vmatpush1.bf16.msra.mxu0 %v1154
        %1177 = vmatprep.subr.bf16.mxu0 0
        %1178 = vmatpush1.bf16.msra.mxu0 %v1155
        %1179 = vmatprep.subr.bf16.mxu0 0
        %1180 = vmatpush1.bf16.msra.mxu0 %v1156
        %1181 = vmatprep.subr.bf16.mxu0 0
        %1182 = vmatpush1.bf16.msra.mxu0 0
        %1183 = vmatprep.subr.bf16.mxu0 0
        %1184 = vmatpush1.bf16.msra.mxu0 0
        %1185 = vmatprep.subr.bf16.mxu0 0
        %1186 = vmatpush1.bf16.msra.mxu0 0
        %1187 = vmatprep.subr.bf16.mxu0 0
        %1188 = vmatpush1.bf16.msra.mxu0 0
        %1189 = vmatprep.subr.bf16.mxu0 0
        %1190 = vmatpush1.bf16.msra.mxu0 0
        %1191 = vmatprep.subr.bf16.mxu0 0
        %1192 = vmatpush1.bf16.msra.mxu0 0
        %1193 = vmatprep.subr.bf16.mxu0 0
        %1194 = vmatpush1.bf16.msra.mxu0 0
        %1195 = vmatprep.subr.bf16.mxu0 0
        %1196 = vmatpush1.bf16.msra.mxu0 0
        %1197 = vmatprep.mubr.bf16.mxu0 0
        %1198 = vmatmul.mubr.bf16.gmra.mrb[0].mxu0 %v1091
        %v1199 = vpop.f32.mrb[0].mxu0
        %v1200 = vadd.f32 %v1115, %v1199
        %v1201 = vpop.f32.mrb[0].mxu0
        %v1202 = vpop.f32.mrb[0].mxu0
        %v1203 = vadd.f32 %v1115, %v1202
        %v1204 = vpop.f32.mrb[0].mxu0
        %1205 = vdwg.mxu0
        %v1206 = vsub.f32 0.0, %v1200
        %v1207 = vsub.f32 0.0, %v1203
        %v1208 = vmul.f32 %v1206, 1.442695
        %v1209 = vpow.pop %v1208
        %v1210 = vmul.f32 %v1207, 1.442695
        %v1211 = vpow.pop %v1210
        %v1212 = vadd.f32 %v1209, 1.0
        %v1213 = vadd.f32 %v1211, 1.0
        %v1214 = vrcp.pop %v1212
        %v1215 = vrcp.pop %v1213
        %v1216 = vmul.f32 %v1200, %v1214
        %v1217 = vmul.f32 %v1203, %v1215
        %v1218 = vpack.c.bf16 %v1217, %v1216
        %s1219 = scalar_lea.vmem [#allocation2], 512
        %v1220 = vld [vmem:[%s1219] sm:$0xf]
        %v1221 = vld [vmem:[%s1219 + $0x4] sm:$0xf]
        %v1222 = vld [vmem:[%s1219 + $0x8] sm:$0xf]
        %v1223 = vld [vmem:[%s1219 + $0xc] sm:$0xf]
        %v1224 = vld [vmem:[%s1219 + $0x10] sm:$0xf]
        %v1225 = vld [vmem:[%s1219 + $0x14] sm:$0xf]
        %v1226 = vld [vmem:[%s1219 + $0x18] sm:$0xf]
        %v1227 = vld [vmem:[%s1219 + $0x1c] sm:$0xf]
        %v1228 = vld [vmem:[%s1219 + $0x20] sm:$0xf]
        %v1229 = vld [vmem:[%s1219 + $0x24] sm:$0xf]
        %v1230 = vld [vmem:[%s1219 + $0x28] sm:$0xf]
        %v1231 = vld [vmem:[%s1219 + $0x2c] sm:$0xf]
        %v1232 = vld [vmem:[%s1219 + $0x30] sm:$0xf]
        %v1233 = vld [vmem:[%s1219 + $0x34] sm:$0xf]
        %v1234 = vld [vmem:[%s1219 + $0x38] sm:$0xf]
        %v1235 = vld [vmem:[%s1219 + $0x3c] sm:$0xf]
        %s1236 = scalar_lea.vmem %s2, 8
        %v1237 = vld [vmem:[%s1236] sm:$0x1]
        %v1239 = vlaneseq
        %v1240 = vshrl.u32 %v1239, 7
        %v1241 = vsub.s32 0, %v1240
        %v1242 = vrot.slane %v1237, %v1241
        %v1260 = vunpack.c.l.b16 %v1220
        %v1261 = vunpack.c.l.b16 %v1221
        %v1262 = vunpack.c.l.b16 %v1222
        %v1263 = vunpack.c.l.b16 %v1223
        %v1264 = vunpack.c.l.b16 %v1224
        %v1265 = vunpack.c.l.b16 %v1225
        %v1266 = vunpack.c.l.b16 %v1226
        %v1267 = vunpack.c.l.b16 %v1227
        %v1268 = vunpack.c.l.b16 %v1228
        %v1269 = vunpack.c.l.b16 %v1229
        %v1270 = vunpack.c.l.b16 %v1230
        %v1271 = vunpack.c.l.b16 %v1231
        %v1272 = vunpack.c.l.b16 %v1232
        %v1273 = vunpack.c.l.b16 %v1233
        %v1274 = vunpack.c.l.b16 %v1234
        %v1275 = vunpack.c.l.b16 %v1235
        %v1276 = vpack.c.b16 %v1261, %v1260
        %v1277 = vpack.c.b16 %v1263, %v1262
        %v1278 = vpack.c.b16 %v1265, %v1264
        %v1279 = vpack.c.b16 %v1267, %v1266
        %v1280 = vpack.c.b16 %v1269, %v1268
        %v1281 = vpack.c.b16 %v1271, %v1270
        %v1282 = vpack.c.b16 %v1273, %v1272
        %v1283 = vpack.c.b16 %v1275, %v1274
        %1292 = vmatprep.subr.bf16.mxu0 0
        %1293 = vmatpush1.bf16.msra.mxu0 %v1276
        %1294 = vmatprep.subr.bf16.mxu0 0
        %1295 = vmatpush1.bf16.msra.mxu0 %v1277
        %1296 = vmatprep.subr.bf16.mxu0 0
        %1297 = vmatpush1.bf16.msra.mxu0 %v1278
        %1298 = vmatprep.subr.bf16.mxu0 0
        %1299 = vmatpush1.bf16.msra.mxu0 %v1279
        %1300 = vmatprep.subr.bf16.mxu0 0
        %1301 = vmatpush1.bf16.msra.mxu0 %v1280
        %1302 = vmatprep.subr.bf16.mxu0 0
        %1303 = vmatpush1.bf16.msra.mxu0 %v1281
        %1304 = vmatprep.subr.bf16.mxu0 0
        %1305 = vmatpush1.bf16.msra.mxu0 %v1282
        %1306 = vmatprep.subr.bf16.mxu0 0
        %1307 = vmatpush1.bf16.msra.mxu0 %v1283
        %1308 = vmatprep.subr.bf16.mxu0 0
        %1309 = vmatpush1.bf16.msra.mxu0 0
        %1310 = vmatprep.subr.bf16.mxu0 0
        %1311 = vmatpush1.bf16.msra.mxu0 0
        %1312 = vmatprep.subr.bf16.mxu0 0
        %1313 = vmatpush1.bf16.msra.mxu0 0
        %1314 = vmatprep.subr.bf16.mxu0 0
        %1315 = vmatpush1.bf16.msra.mxu0 0
        %1316 = vmatprep.subr.bf16.mxu0 0
        %1317 = vmatpush1.bf16.msra.mxu0 0
        %1318 = vmatprep.subr.bf16.mxu0 0
        %1319 = vmatpush1.bf16.msra.mxu0 0
        %1320 = vmatprep.subr.bf16.mxu0 0
        %1321 = vmatpush1.bf16.msra.mxu0 0
        %1322 = vmatprep.subr.bf16.mxu0 0
        %1323 = vmatpush1.bf16.msra.mxu0 0
        %1324 = vmatprep.mubr.bf16.mxu0 0
        %1325 = vmatmul.mubr.bf16.gmra.mrb[0].mxu0 %v1218
        %v1326 = vpop.f32.mrb[0].mxu0
        %v1327 = vadd.f32 %v1242, %v1326
        %v1328 = vpop.f32.mrb[0].mxu0
        %v1329 = vpop.f32.mrb[0].mxu0
        %v1330 = vadd.f32 %v1242, %v1329
        %v1331 = vpop.f32.mrb[0].mxu0
        %1332 = vdwg.mxu0
        %v1333 = vsub.f32 0.0, %v1327
        %v1334 = vsub.f32 0.0, %v1330
        %v1335 = vmul.f32 %v1333, 1.442695
        %v1336 = vpow.pop %v1335
        %v1337 = vmul.f32 %v1334, 1.442695
        %v1338 = vpow.pop %v1337
        %v1339 = vadd.f32 %v1336, 1.0
        %v1340 = vadd.f32 %v1338, 1.0
        %v1341 = vrcp.pop %v1339
        %v1342 = vrcp.pop %v1340
        %v1343 = vmul.f32 %v1327, %v1341
        %v1344 = vmul.f32 %v1330, %v1342
        %v1345 = vpack.c.bf16 %v1344, %v1343
        %v1346 = vunpack.c.l.bf16 %v1345
        %v1347 = vunpack.c.h.bf16 %v1345
        %v1348 = vadd.f32 %v953, %v1346
        %v1349 = vadd.f32 %v954, %v1347
        %v1350 = vpack.c.bf16 %v1349, %v1348
        %v1352 = vunpack.c.l.b16 %v1350
        %v1353 = vunpack.c.h.b16 %v1350
        %v1354 = vpack.c.b16 %v1352, %v1352
        %v1355 = vpack.c.b16 %v1353, %v1353
        %s1358 = scalar_lea.vmem %s210, 8 [#allocation5]
        %1359 = vst [vmem:[%s1358] sm:$0xf] %v1354
        %1360 = vst [vmem:[%s1358 + $0x4] sm:$0xf] %v1355
        %s1361 = scalar_lea.vmem [#allocation2], 576
        %v1362 = vld [vmem:[%s1361] sm:$0xf]
        %v1363 = vld [vmem:[%s1361 + $0x4] sm:$0xf]
        %v1364 = vld [vmem:[%s1361 + $0x8] sm:$0xf]
        %v1365 = vld [vmem:[%s1361 + $0xc] sm:$0xf]
        %v1366 = vld [vmem:[%s1361 + $0x10] sm:$0xf]
        %v1367 = vld [vmem:[%s1361 + $0x14] sm:$0xf]
        %v1368 = vld [vmem:[%s1361 + $0x18] sm:$0xf]
        %v1369 = vld [vmem:[%s1361 + $0x1c] sm:$0xf]
        %v1370 = vld [vmem:[%s1361 + $0x20] sm:$0xf]
        %v1371 = vld [vmem:[%s1361 + $0x24] sm:$0xf]
        %v1372 = vld [vmem:[%s1361 + $0x28] sm:$0xf]
        %v1373 = vld [vmem:[%s1361 + $0x2c] sm:$0xf]
        %v1374 = vld [vmem:[%s1361 + $0x30] sm:$0xf]
        %v1375 = vld [vmem:[%s1361 + $0x34] sm:$0xf]
        %v1376 = vld [vmem:[%s1361 + $0x38] sm:$0xf]
        %v1377 = vld [vmem:[%s1361 + $0x3c] sm:$0xf]
        %s1378 = scalar_lea.vmem %s2, 9
        %v1379 = vld [vmem:[%s1378] sm:$0x1]
        %v1381 = vlaneseq
        %v1382 = vshrl.u32 %v1381, 7
        %v1383 = vsub.s32 0, %v1382
        %v1384 = vrot.slane %v1379, %v1383
        %v1402 = vunpack.c.l.b16 %v1362
        %v1403 = vunpack.c.l.b16 %v1363
        %v1404 = vunpack.c.l.b16 %v1364
        %v1405 = vunpack.c.l.b16 %v1365
        %v1406 = vunpack.c.l.b16 %v1366
        %v1407 = vunpack.c.l.b16 %v1367
        %v1408 = vunpack.c.l.b16 %v1368
        %v1409 = vunpack.c.l.b16 %v1369
        %v1410 = vunpack.c.l.b16 %v1370
        %v1411 = vunpack.c.l.b16 %v1371
        %v1412 = vunpack.c.l.b16 %v1372
        %v1413 = vunpack.c.l.b16 %v1373
        %v1414 = vunpack.c.l.b16 %v1374
        %v1415 = vunpack.c.l.b16 %v1375
        %v1416 = vunpack.c.l.b16 %v1376
        %v1417 = vunpack.c.l.b16 %v1377
        %v1418 = vpack.c.b16 %v1403, %v1402
        %v1419 = vpack.c.b16 %v1405, %v1404
        %v1420 = vpack.c.b16 %v1407, %v1406
        %v1421 = vpack.c.b16 %v1409, %v1408
        %v1422 = vpack.c.b16 %v1411, %v1410
        %v1423 = vpack.c.b16 %v1413, %v1412
        %v1424 = vpack.c.b16 %v1415, %v1414
        %v1425 = vpack.c.b16 %v1417, %v1416
        %1434 = vmatprep.subr.bf16.mxu0 0
        %1435 = vmatpush1.bf16.msra.mxu0 %v1418
        %1436 = vmatprep.subr.bf16.mxu0 0
        %1437 = vmatpush1.bf16.msra.mxu0 %v1419
        %1438 = vmatprep.subr.bf16.mxu0 0
        %1439 = vmatpush1.bf16.msra.mxu0 %v1420
        %1440 = vmatprep.subr.bf16.mxu0 0
        %1441 = vmatpush1.bf16.msra.mxu0 %v1421
        %1442 = vmatprep.subr.bf16.mxu0 0
        %1443 = vmatpush1.bf16.msra.mxu0 %v1422
        %1444 = vmatprep.subr.bf16.mxu0 0
        %1445 = vmatpush1.bf16.msra.mxu0 %v1423
        %1446 = vmatprep.subr.bf16.mxu0 0
        %1447 = vmatpush1.bf16.msra.mxu0 %v1424
        %1448 = vmatprep.subr.bf16.mxu0 0
        %1449 = vmatpush1.bf16.msra.mxu0 %v1425
        %1450 = vmatprep.subr.bf16.mxu0 0
        %1451 = vmatpush1.bf16.msra.mxu0 0
        %1452 = vmatprep.subr.bf16.mxu0 0
        %1453 = vmatpush1.bf16.msra.mxu0 0
        %1454 = vmatprep.subr.bf16.mxu0 0
        %1455 = vmatpush1.bf16.msra.mxu0 0
        %1456 = vmatprep.subr.bf16.mxu0 0
        %1457 = vmatpush1.bf16.msra.mxu0 0
        %1458 = vmatprep.subr.bf16.mxu0 0
        %1459 = vmatpush1.bf16.msra.mxu0 0
        %1460 = vmatprep.subr.bf16.mxu0 0
        %1461 = vmatpush1.bf16.msra.mxu0 0
        %1462 = vmatprep.subr.bf16.mxu0 0
        %1463 = vmatpush1.bf16.msra.mxu0 0
        %1464 = vmatprep.subr.bf16.mxu0 0
        %1465 = vmatpush1.bf16.msra.mxu0 0
        %1466 = vmatprep.mubr.bf16.mxu0 0
        %1467 = vmatmul.mubr.bf16.gmra.mrb[0].mxu0 %v1350
        %v1468 = vpop.f32.mrb[0].mxu0
        %v1469 = vadd.f32 %v1384, %v1468
        %v1470 = vpop.f32.mrb[0].mxu0
        %v1471 = vpop.f32.mrb[0].mxu0
        %v1472 = vadd.f32 %v1384, %v1471
        %v1473 = vpop.f32.mrb[0].mxu0
        %1474 = vdwg.mxu0
        %v1475 = vsub.f32 0.0, %v1469
        %v1476 = vsub.f32 0.0, %v1472
        %v1477 = vmul.f32 %v1475, 1.442695
        %v1478 = vpow.pop %v1477
        %v1479 = vmul.f32 %v1476, 1.442695
        %v1480 = vpow.pop %v1479
        %v1481 = vadd.f32 %v1478, 1.0
        %v1482 = vadd.f32 %v1480, 1.0
        %v1483 = vrcp.pop %v1481
        %v1484 = vrcp.pop %v1482
        %v1485 = vmul.f32 %v1469, %v1483
        %v1486 = vmul.f32 %v1472, %v1484
        %v1487 = vpack.c.bf16 %v1486, %v1485
        %s1488 = scalar_lea.vmem [#allocation2], 640
        %v1489 = vld [vmem:[%s1488] sm:$0xf]
        %v1490 = vld [vmem:[%s1488 + $0x4] sm:$0xf]
        %v1491 = vld [vmem:[%s1488 + $0x8] sm:$0xf]
        %v1492 = vld [vmem:[%s1488 + $0xc] sm:$0xf]
        %v1493 = vld [vmem:[%s1488 + $0x10] sm:$0xf]
        %v1494 = vld [vmem:[%s1488 + $0x14] sm:$0xf]
        %v1495 = vld [vmem:[%s1488 + $0x18] sm:$0xf]
        %v1496 = vld [vmem:[%s1488 + $0x1c] sm:$0xf]
        %v1497 = vld [vmem:[%s1488 + $0x20] sm:$0xf]
        %v1498 = vld [vmem:[%s1488 + $0x24] sm:$0xf]
        %v1499 = vld [vmem:[%s1488 + $0x28] sm:$0xf]
        %v1500 = vld [vmem:[%s1488 + $0x2c] sm:$0xf]
        %v1501 = vld [vmem:[%s1488 + $0x30] sm:$0xf]
        %v1502 = vld [vmem:[%s1488 + $0x34] sm:$0xf]
        %v1503 = vld [vmem:[%s1488 + $0x38] sm:$0xf]
        %v1504 = vld [vmem:[%s1488 + $0x3c] sm:$0xf]
        %s1505 = scalar_lea.vmem %s2, 10
        %v1506 = vld [vmem:[%s1505] sm:$0x1]
        %v1508 = vlaneseq
        %v1509 = vshrl.u32 %v1508, 7
        %v1510 = vsub.s32 0, %v1509
        %v1511 = vrot.slane %v1506, %v1510
        %v1529 = vunpack.c.l.b16 %v1489
        %v1530 = vunpack.c.l.b16 %v1490
        %v1531 = vunpack.c.l.b16 %v1491
        %v1532 = vunpack.c.l.b16 %v1492
        %v1533 = vunpack.c.l.b16 %v1493
        %v1534 = vunpack.c.l.b16 %v1494
        %v1535 = vunpack.c.l.b16 %v1495
        %v1536 = vunpack.c.l.b16 %v1496
        %v1537 = vunpack.c.l.b16 %v1497
        %v1538 = vunpack.c.l.b16 %v1498
        %v1539 = vunpack.c.l.b16 %v1499
        %v1540 = vunpack.c.l.b16 %v1500
        %v1541 = vunpack.c.l.b16 %v1501
        %v1542 = vunpack.c.l.b16 %v1502
        %v1543 = vunpack.c.l.b16 %v1503
        %v1544 = vunpack.c.l.b16 %v1504
        %v1545 = vpack.c.b16 %v1530, %v1529
        %v1546 = vpack.c.b16 %v1532, %v1531
        %v1547 = vpack.c.b16 %v1534, %v1533
        %v1548 = vpack.c.b16 %v1536, %v1535
        %v1549 = vpack.c.b16 %v1538, %v1537
        %v1550 = vpack.c.b16 %v1540, %v1539
        %v1551 = vpack.c.b16 %v1542, %v1541
        %v1552 = vpack.c.b16 %v1544, %v1543
        %1561 = vmatprep.subr.bf16.mxu0 0
        %1562 = vmatpush1.bf16.msra.mxu0 %v1545
        %1563 = vmatprep.subr.bf16.mxu0 0
        %1564 = vmatpush1.bf16.msra.mxu0 %v1546
        %1565 = vmatprep.subr.bf16.mxu0 0
        %1566 = vmatpush1.bf16.msra.mxu0 %v1547
        %1567 = vmatprep.subr.bf16.mxu0 0
        %1568 = vmatpush1.bf16.msra.mxu0 %v1548
        %1569 = vmatprep.subr.bf16.mxu0 0
        %1570 = vmatpush1.bf16.msra.mxu0 %v1549
        %1571 = vmatprep.subr.bf16.mxu0 0
        %1572 = vmatpush1.bf16.msra.mxu0 %v1550
        %1573 = vmatprep.subr.bf16.mxu0 0
        %1574 = vmatpush1.bf16.msra.mxu0 %v1551
        %1575 = vmatprep.subr.bf16.mxu0 0
        %1576 = vmatpush1.bf16.msra.mxu0 %v1552
        %1577 = vmatprep.subr.bf16.mxu0 0
        %1578 = vmatpush1.bf16.msra.mxu0 0
        %1579 = vmatprep.subr.bf16.mxu0 0
        %1580 = vmatpush1.bf16.msra.mxu0 0
        %1581 = vmatprep.subr.bf16.mxu0 0
        %1582 = vmatpush1.bf16.msra.mxu0 0
        %1583 = vmatprep.subr.bf16.mxu0 0
        %1584 = vmatpush1.bf16.msra.mxu0 0
        %1585 = vmatprep.subr.bf16.mxu0 0
        %1586 = vmatpush1.bf16.msra.mxu0 0
        %1587 = vmatprep.subr.bf16.mxu0 0
        %1588 = vmatpush1.bf16.msra.mxu0 0
        %1589 = vmatprep.subr.bf16.mxu0 0
        %1590 = vmatpush1.bf16.msra.mxu0 0
        %1591 = vmatprep.subr.bf16.mxu0 0
        %1592 = vmatpush1.bf16.msra.mxu0 0
        %1593 = vmatprep.mubr.bf16.mxu0 0
        %1594 = vmatmul.mubr.bf16.gmra.mrb[0].mxu0 %v1487
        %v1595 = vpop.f32.mrb[0].mxu0
        %v1596 = vadd.f32 %v1511, %v1595
        %v1597 = vpop.f32.mrb[0].mxu0
        %v1598 = vpop.f32.mrb[0].mxu0
        %v1599 = vadd.f32 %v1511, %v1598
        %v1600 = vpop.f32.mrb[0].mxu0
        %1601 = vdwg.mxu0
        %v1602 = vsub.f32 0.0, %v1596
        %v1603 = vsub.f32 0.0, %v1599
        %v1604 = vmul.f32 %v1602, 1.442695
        %v1605 = vpow.pop %v1604
        %v1606 = vmul.f32 %v1603, 1.442695
        %v1607 = vpow.pop %v1606
        %v1608 = vadd.f32 %v1605, 1.0
        %v1609 = vadd.f32 %v1607, 1.0
        %v1610 = vrcp.pop %v1608
        %v1611 = vrcp.pop %v1609
        %v1612 = vmul.f32 %v1596, %v1610
        %v1613 = vmul.f32 %v1599, %v1611
        %v1614 = vpack.c.bf16 %v1613, %v1612
        %s1615 = scalar_lea.vmem [#allocation2], 704
        %v1616 = vld [vmem:[%s1615] sm:$0xf]
        %v1617 = vld [vmem:[%s1615 + $0x4] sm:$0xf]
        %v1618 = vld [vmem:[%s1615 + $0x8] sm:$0xf]
        %v1619 = vld [vmem:[%s1615 + $0xc] sm:$0xf]
        %v1620 = vld [vmem:[%s1615 + $0x10] sm:$0xf]
        %v1621 = vld [vmem:[%s1615 + $0x14] sm:$0xf]
        %v1622 = vld [vmem:[%s1615 + $0x18] sm:$0xf]
        %v1623 = vld [vmem:[%s1615 + $0x1c] sm:$0xf]
        %v1624 = vld [vmem:[%s1615 + $0x20] sm:$0xf]
        %v1625 = vld [vmem:[%s1615 + $0x24] sm:$0xf]
        %v1626 = vld [vmem:[%s1615 + $0x28] sm:$0xf]
        %v1627 = vld [vmem:[%s1615 + $0x2c] sm:$0xf]
        %v1628 = vld [vmem:[%s1615 + $0x30] sm:$0xf]
        %v1629 = vld [vmem:[%s1615 + $0x34] sm:$0xf]
        %v1630 = vld [vmem:[%s1615 + $0x38] sm:$0xf]
        %v1631 = vld [vmem:[%s1615 + $0x3c] sm:$0xf]
        %s1632 = scalar_lea.vmem %s2, 11
        %v1633 = vld [vmem:[%s1632] sm:$0x1]
        %v1635 = vlaneseq
        %v1636 = vshrl.u32 %v1635, 7
        %v1637 = vsub.s32 0, %v1636
        %v1638 = vrot.slane %v1633, %v1637
        %v1656 = vunpack.c.l.b16 %v1616
        %v1657 = vunpack.c.l.b16 %v1617
        %v1658 = vunpack.c.l.b16 %v1618
        %v1659 = vunpack.c.l.b16 %v1619
        %v1660 = vunpack.c.l.b16 %v1620
        %v1661 = vunpack.c.l.b16 %v1621
        %v1662 = vunpack.c.l.b16 %v1622
        %v1663 = vunpack.c.l.b16 %v1623
        %v1664 = vunpack.c.l.b16 %v1624
        %v1665 = vunpack.c.l.b16 %v1625
        %v1666 = vunpack.c.l.b16 %v1626
        %v1667 = vunpack.c.l.b16 %v1627
        %v1668 = vunpack.c.l.b16 %v1628
        %v1669 = vunpack.c.l.b16 %v1629
        %v1670 = vunpack.c.l.b16 %v1630
        %v1671 = vunpack.c.l.b16 %v1631
        %v1672 = vpack.c.b16 %v1657, %v1656
        %v1673 = vpack.c.b16 %v1659, %v1658
        %v1674 = vpack.c.b16 %v1661, %v1660
        %v1675 = vpack.c.b16 %v1663, %v1662
        %v1676 = vpack.c.b16 %v1665, %v1664
        %v1677 = vpack.c.b16 %v1667, %v1666
        %v1678 = vpack.c.b16 %v1669, %v1668
        %v1679 = vpack.c.b16 %v1671, %v1670
        %1688 = vmatprep.subr.bf16.mxu0 0
        %1689 = vmatpush1.bf16.msra.mxu0 %v1672
        %1690 = vmatprep.subr.bf16.mxu0 0
        %1691 = vmatpush1.bf16.msra.mxu0 %v1673
        %1692 = vmatprep.subr.bf16.mxu0 0
        %1693 = vmatpush1.bf16.msra.mxu0 %v1674
        %1694 = vmatprep.subr.bf16.mxu0 0
        %1695 = vmatpush1.bf16.msra.mxu0 %v1675
        %1696 = vmatprep.subr.bf16.mxu0 0
        %1697 = vmatpush1.bf16.msra.mxu0 %v1676
        %1698 = vmatprep.subr.bf16.mxu0 0
        %1699 = vmatpush1.bf16.msra.mxu0 %v1677
        %1700 = vmatprep.subr.bf16.mxu0 0
        %1701 = vmatpush1.bf16.msra.mxu0 %v1678
        %1702 = vmatprep.subr.bf16.mxu0 0
        %1703 = vmatpush1.bf16.msra.mxu0 %v1679
        %1704 = vmatprep.subr.bf16.mxu0 0
        %1705 = vmatpush1.bf16.msra.mxu0 0
        %1706 = vmatprep.subr.bf16.mxu0 0
        %1707 = vmatpush1.bf16.msra.mxu0 0
        %1708 = vmatprep.subr.bf16.mxu0 0
        %1709 = vmatpush1.bf16.msra.mxu0 0
        %1710 = vmatprep.subr.bf16.mxu0 0
        %1711 = vmatpush1.bf16.msra.mxu0 0
        %1712 = vmatprep.subr.bf16.mxu0 0
        %1713 = vmatpush1.bf16.msra.mxu0 0
        %1714 = vmatprep.subr.bf16.mxu0 0
        %1715 = vmatpush1.bf16.msra.mxu0 0
        %1716 = vmatprep.subr.bf16.mxu0 0
        %1717 = vmatpush1.bf16.msra.mxu0 0
        %1718 = vmatprep.subr.bf16.mxu0 0
        %1719 = vmatpush1.bf16.msra.mxu0 0
        %1720 = vmatprep.mubr.bf16.mxu0 0
        %1721 = vmatmul.mubr.bf16.gmra.mrb[0].mxu0 %v1614
        %v1722 = vpop.f32.mrb[0].mxu0
        %v1723 = vadd.f32 %v1638, %v1722
        %v1724 = vpop.f32.mrb[0].mxu0
        %v1725 = vpop.f32.mrb[0].mxu0
        %v1726 = vadd.f32 %v1638, %v1725
        %v1727 = vpop.f32.mrb[0].mxu0
        %1728 = vdwg.mxu0
        %v1729 = vsub.f32 0.0, %v1723
        %v1730 = vsub.f32 0.0, %v1726
        %v1731 = vmul.f32 %v1729, 1.442695
        %v1732 = vpow.pop %v1731
        %v1733 = vmul.f32 %v1730, 1.442695
        %v1734 = vpow.pop %v1733
        %v1735 = vadd.f32 %v1732, 1.0
        %v1736 = vadd.f32 %v1734, 1.0
        %v1737 = vrcp.pop %v1735
        %v1738 = vrcp.pop %v1736
        %v1739 = vmul.f32 %v1723, %v1737
        %v1740 = vmul.f32 %v1726, %v1738
        %v1741 = vpack.c.bf16 %v1740, %v1739
        %v1742 = vunpack.c.l.bf16 %v1741
        %v1743 = vunpack.c.h.bf16 %v1741
        %v1744 = vadd.f32 %v1348, %v1742
        %v1745 = vadd.f32 %v1349, %v1743
        %v1746 = vpack.c.bf16 %v1745, %v1744
        %v1748 = vunpack.c.l.b16 %v1746
        %v1749 = vunpack.c.h.b16 %v1746
        %v1750 = vpack.c.b16 %v1748, %v1748
        %v1751 = vpack.c.b16 %v1749, %v1749
        %s1754 = scalar_lea.vmem %s210, 16 [#allocation5]
        %1755 = vst [vmem:[%s1754] sm:$0xf] %v1750
        %1756 = vst [vmem:[%s1754 + $0x4] sm:$0xf] %v1751
        %v1757 = vrot.slane %v1744, 4
        %v1758 = vmax.f32 %v1744, %v1757
        %v1759 = vrot.slane %v1758, 2
        %v1760 = vmax.f32 %v1758, %v1759
        %v1761 = vrot.slane %v1760, 1
        %v1762 = vmax.f32 %v1760, %v1761
        %v1763 = vrot.slane %v1745, 4
        %v1764 = vmax.f32 %v1745, %v1763
        %v1765 = vrot.slane %v1764, 2
        %v1766 = vmax.f32 %v1764, %v1765
        %v1767 = vrot.slane %v1766, 1
        %v1768 = vmax.f32 %v1766, %v1767
        %vm1771 = vcmask 1041409
        %v1772 = vsel %vm1771, %v1768, %v1762
        %1774 = vst [vmem:[%s217] sm:$0x3] %v1772
        %s1775 = sand.u32 %s99, 1
        %s1776 = scalar_lea.sflag [#allocation4], %s1775
        %s1777 = sand.u32 %s99, 1
        %s1778 = smul.addr %s1777, 24
        %s1779 = scalar_lea.vmem [#allocation5], %s1778
        %s1780 = sand.u32 %s125, 1
        %s1781 = scalar_lea.sflag [#allocation7], %s1780
        %s1782 = sand.u32 %s125, 1
        %s1783 = smul.addr %s1782, 2
        %s1784 = scalar_lea.vmem [#allocation6], %s1783
        // Predicated region
        $region37: #{tpu_custom_call.1} parent=31 // pred_check
          %p1785 = pneg %p109
        $region38: #{tpu_custom_call.1} parent=31 // pred_check_branch
          %1787 = sbr.rel (%p1785) target = $region40
        $region39: #{tpu_custom_call.1} parent=31 // pred_region
          #allocation9 [shape = 'u32[6]{0}', space=smem, size = 0x18, scoped, tag = 'DMA stride descriptor']
          %s1788 = smul.u32 2, %s23
          %s1790 = ssub.s32 384, 384
          %1791 = vsyncadd %s1776, %s1790
          %s1792 = smul.addr %s1788, 64
          %s1793 = scalar_lea.hbm %s3, %s1792
          %s1795 = sshll.u32 1, 14
          %s1796 = sxor.u32 4294967295, %s1795
          %s1799 = sshll.u32 7, 18
          %s1800 = sxor.u32 4294967295, %s1799
          %s1801 = sand.u32 0, %s1800
          %s1803 = sor.u32 %s1801, 0
          %s1805 = sshll.u32 3, 24
          %s1806 = sxor.u32 4294967295, %s1805
          %s1807 = sand.u32 %s1803, %s1806
          %s1809 = sor.u32 %s1807, 0
          %s1810 = sshll.u32 %s1779, 4
          %s1811 = int_to_ptr.vmem [resolvable:$true] %s1810
          %1817 = sst [smem:[#allocation9]] 128
          %s1818 = scalar_lea.smem [#allocation9], 1
          %1819 = sst [smem:[%s1818]] 512
          %s1820 = scalar_lea.smem [#allocation9], 2
          %1821 = sst [smem:[%s1820]] 2
          %s1822 = scalar_lea.smem [#allocation9], 3
          %1823 = sst [smem:[%s1822]] 64
          %s1824 = scalar_lea.smem [#allocation9], 4
          %1825 = sst [smem:[%s1824]] 64
          %s1826 = scalar_lea.smem [#allocation9], 5
          %1827 = sst [smem:[%s1826]] 4
          %1829 = dma.general %s1811, 384, %s1793, %s1776, [#allocation8], [#allocation9], %s1809, 0
        $region40: #{tpu_custom_call.1} parent=31 // pred_fallthru
          _
        // Predicated region
        $region41: #{tpu_custom_call.1} parent=31 // pred_check
          %p1830 = pneg %p135
        $region42: #{tpu_custom_call.1} parent=31 // pred_check_branch
          %1832 = sbr.rel (%p1830) target = $region44
        $region43: #{tpu_custom_call.1} parent=31 // pred_region
          %s1834 = ssub.s32 32, 32
          %1835 = vsyncadd %s1781, %s1834
          %s1836 = smul.addr %s23, 32
          %s1837 = scalar_lea.hbm %s4, %s1836
          %s1839 = sshll.u32 %s1784, 4
          %s1840 = int_to_ptr.vmem [resolvable:$true] %s1839
          %1842 = dma.vmem_to_hbm [thread:$0]  %s1840, 32, %s1837, %s1781
        $region44: #{tpu_custom_call.1} parent=31 // pred_fallthru
          _
      $region32: #{tpu_custom_call.1} parent=5 // pred_fallthru
        _
      %p1843 = scmp.le.s32.totalorder 2, %s18
      // Predicated region
      $region45: #{tpu_custom_call.1} parent=5 // pred_check
        %p1844 = pneg %p1843
      $region46: #{tpu_custom_call.1} parent=5 // pred_check_branch
        %1846 = sbr.rel (%p1844) target = $region48
      $region47: #{tpu_custom_call.1} parent=5 // pred_region
        %s1847 = ssub.s32 %s18, 2
        // Predicated region
        $region49: #{tpu_custom_call.1} parent=47 // pred_check
          %p1848 = pneg %p115
        $region50: #{tpu_custom_call.1} parent=47 // pred_check_branch
          %1850 = sbr.rel (%p1848) target = $region52
        $region51: #{tpu_custom_call.1} parent=47 // pred_region
          %s1851 = sand.u32 %s100, 1
          %s1852 = scalar_lea.sflag [#allocation4], %s1851
          %s1853 = sand.u32 %s100, 1
          %s1854 = smul.addr %s1853, 24
          %s1855 = scalar_lea.vmem [#allocation5], %s1854
          %1856 = dma.done %s1852, 384
        $region52: #{tpu_custom_call.1} parent=47 // pred_fallthru
          _
        // Predicated region
        $region53: #{tpu_custom_call.1} parent=47 // pred_check
          %p1857 = pneg %p141
        $region54: #{tpu_custom_call.1} parent=47 // pred_check_branch
          %1859 = sbr.rel (%p1857) target = $region56
        $region55: #{tpu_custom_call.1} parent=47 // pred_region
          %s1860 = sand.u32 %s126, 1
          %s1861 = scalar_lea.sflag [#allocation7], %s1860
          %s1862 = sand.u32 %s126, 1
          %s1863 = smul.addr %s1862, 2
          %s1864 = scalar_lea.vmem [#allocation6], %s1863
          %1865 = dma.done %s1861, 32
        $region56: #{tpu_custom_call.1} parent=47 // pred_fallthru
          _
      $region48: #{tpu_custom_call.1} parent=5 // pred_fallthru
        _
    $region6: #{tpu_custom_call.1} parent=1 // loop_footer
      %s22 = sadd.s32 1, %s18
    $region7: #{tpu_custom_call.1} parent=1 // loop_footer_branch
      %17 = sbr.rel target = $region3
    $region8: #{tpu_custom_call.1} parent=1 // loop_exit
      _
    %1866 = vsyncpa [#allocation3], 1
    %s1867 = scalar_lea.sflag [#allocation3], 1
    %1868 = vsyncpa %s1867, 1
    %1869 = vsyncpa [#allocation4], 1
    %s1870 = scalar_lea.sflag [#allocation4], 1
    %1871 = vsyncpa %s1870, 1
    %1872 = vsyncpa [#allocation7], 1
    %s1873 = scalar_lea.sflag [#allocation7], 1
    %1874 = vsyncpa %s1873, 1

</llo_original>
